<compile_context>
chip_gen: v6e
topology: v6e:2x2x1
jax: 0.10.0
libtpu: 0.0.40
codegen_flags: <defaults>
</compile_context>

<pallas_src>
import functools

import jax
import jax.numpy as jnp
from jax.experimental import pallas as pl
from jax.experimental.pallas import tpu as pltpu


def _mag_kernel(text_ref, vis_ref, aco_ref, wt_ref, wv_ref, wa_ref, p_ref,
                out_ref, *, dt, beta_shift, ln_eps):
    f32 = jnp.float32
    mxu_dt = wt_ref.dtype  # bf16 matmul operands; f32 accumulation on the MXU

    text_f32 = text_ref[...].astype(f32)

    # Three lane-dense MXU calls (output width 2*Dt each), bf16 in / f32 acc.
    zt = jnp.dot(text_ref[...].astype(mxu_dt), wt_ref[...],
                 preferred_element_type=f32)   # [pre_v | pre_a]
    zv = jnp.dot(vis_ref[...].astype(mxu_dt), wv_ref[...],
                 preferred_element_type=f32)   # [pre_v | h_v ]
    za = jnp.dot(aco_ref[...].astype(mxu_dt), wa_ref[...],
                 preferred_element_type=f32)   # [pre_a | h_a ]

    b_hv = p_ref[0:1, :]
    b_ha = p_ref[1:2, :]
    b_v = p_ref[2:3, :]
    b_a = p_ref[3:4, :]
    ln_g = p_ref[4:5, :]
    ln_b = p_ref[5:6, :]

    weight_v = jnp.maximum(zt[:, :dt] + zv[:, :dt] + b_hv, 0.0)
    weight_a = jnp.maximum(zt[:, dt:] + za[:, :dt] + b_ha, 0.0)
    h_v = zv[:, dt:] + b_v
    h_a = za[:, dt:] + b_a
    h_m = weight_v * h_v + weight_a * h_a

    em_norm = jnp.sqrt(jnp.sum(text_f32 * text_f32, axis=-1, keepdims=True))
    hm_norm = jnp.sqrt(jnp.sum(h_m * h_m, axis=-1, keepdims=True))
    hm_norm = jnp.where(hm_norm == 0.0, 1.0, hm_norm)
    # Divide on the EUP slot (approx reciprocal) instead of the VPU.
    thresh = em_norm * pl.reciprocal(hm_norm + 1e-6, approx=True) * beta_shift
    alpha = jnp.minimum(thresh, 1.0)

    x = alpha * h_m + text_f32

    # LayerNorm over the hidden (last) dim.
    mean = jnp.mean(x, axis=-1, keepdims=True)
    centered = x - mean
    var = jnp.mean(centered * centered, axis=-1, keepdims=True)
    y = centered * jax.lax.rsqrt(var + ln_eps)
    out = y * ln_g + ln_b

    # Dropout: eval mode -> identity.  # TODO(synk): training-mode dropout
    out_ref[...] = out.astype(out_ref.dtype)


def _round_up(x, m):
    return (x + m - 1) // m * m


def _cdiv(a, b):
    return -(-a // b)


def _tpu_budgets():
    """Best-effort (VMEM capacity, TensorCore count) query with safe fallbacks."""
    vmem_cap = 64 * 2**20   # v7x per-core capacity (most restrictive generation)
    n_cores = 2             # assume 2 TCs (v7x); costs at most one extra tiny step elsewhere
    try:
        info = pltpu.get_tpu_info()
        cap = getattr(info, "vmem_capacity_bytes", None)
        if cap:
            vmem_cap = int(cap)
        for attr in ("num_cores", "core_count", "tensorcores_per_chip",
                     "num_tensorcores"):
            v = getattr(info, attr, None)
            if v:
                n_cores = max(1, int(v))
                break
    except Exception:
        pass
    return vmem_cap, n_cores


def mag_forward(text, visual, acoustic, params, *, beta_shift=1.0, ln_eps=1e-5,
                block_rows=1024, mxu_dtype=jnp.bfloat16):
    """text: [B,S,Dt], visual: [B,S,Dv], acoustic: [B,S,Da] -> [B,S,Dt]."""
    B, S, Dt = text.shape
    Dv = visual.shape[-1]
    Da = acoustic.shape[-1]
    N = B * S
    Do = 2 * Dt  # fused matmul output width

    # Lane alignment: keeps zt[:, :Dt] / zt[:, Dt:] slices on (8,128) tile
    # boundaries (demo Dt=128 and production Dt=768 both satisfy this).
    assert Dt % 128 == 0, (
        "hidden size must be a multiple of 128; TODO(synk): pad Dt otherwise")

    f32 = jnp.float32
    W_hv, b_hv = params["W_hv"]        # (Dt, Dv+Dt), (Dt,)
    W_ha, b_ha = params["W_ha"]        # (Dt, Da+Dt), (Dt,)
    W_v, b_v = params["W_v"]           # (Dt, Dv),    (Dt,)
    W_a, b_a = params["W_a"]           # (Dt, Da),    (Dt,)
    ln_g, ln_b = params["LN"]          # (Dt,), (Dt,)

    # nn.Linear weights are (out, in); transpose to (in, out) and fuse per input
    # stream so every MXU call has a lane-dense 2*Dt-wide output.  Keep the
    # matmul weights in bf16 (f32 accumulation happens on the MXU).
    wt = jnp.concatenate([W_hv[:, Dv:].T, W_ha[:, Da:].T], axis=1).astype(mxu_dtype)
    wv = jnp.concatenate([W_hv[:, :Dv].T, W_v.T], axis=1).astype(mxu_dtype)
    wa = jnp.concatenate([W_ha[:, :Da].T, W_a.T], axis=1).astype(mxu_dtype)
    # Biases + LayerNorm params fused into a single f32 slab (one input stream).
    pslab = jnp.stack([b_hv, b_ha, b_v, b_a, ln_g, ln_b]).astype(f32)  # (6, Dt)

    text2 = text.reshape(N, Dt)
    vis2 = visual.reshape(N, Dv)
    aco2 = acoustic.reshape(N, Da)

    itemsize = int(jnp.dtype(text.dtype).itemsize)
    w_itemsize = int(jnp.dtype(mxu_dtype).itemsize)
    vmem_cap, n_cores = _tpu_budgets()

    def vmem_need(rows):
        io = 2 * rows * (2 * Dt + Dv + Da) * itemsize                 # double-buffered I/O tiles
        weights = 2 * (Dt + Dv + Da) * Do * w_itemsize + 2 * 6 * Dt * 4
        temps = rows * (3 * Do + 4 * Dt) * 4                          # zt/zv/za + h_m/x/... (f32)
        return io + weights + temps

    # Row-tile selection: biggest tile within ~half the VMEM capacity, with at
    # least `n_cores` grid steps (balanced across TensorCores when > 1).
    n_r = _round_up(N, 8)
    br = max(8, min(_round_up(block_rows, 8), n_r))
    while br > 8 and _cdiv(n_r, br) < n_cores:
        br = max(8, _round_up(br // 2, 8))
    work_budget = max(8 * 2**20, vmem_cap // 2)
    while br > 64 and vmem_need(br) > work_budget:
        br = max(64, _round_up(br // 2, 8))
    if n_cores > 1:
        steps = _cdiv(n_r, br)
        if steps > 1 and steps % n_cores:
            br = max(8, _round_up(_cdiv(n_r, _round_up(steps, n_cores)), 8))

    N_pad = _round_up(N, br)
    if N_pad != N:
        pad = ((0, N_pad - N), (0, 0))
        text2 = jnp.pad(text2, pad)
        vis2 = jnp.pad(vis2, pad)
        aco2 = jnp.pad(aco2, pad)

    vmem_limit = int(max(16 * 2**20,
                         min(vmem_need(br) * 3 // 2 + (2 << 20),
                             int(vmem_cap * 0.85), 100 * 2**20)))

    kernel = functools.partial(_mag_kernel, dt=Dt, beta_shift=float(beta_shift),
                               ln_eps=float(ln_eps))

    def run(single_buffer_params):
        row_spec = lambda d: pl.BlockSpec((br, d), lambda i: (i, 0))
        if single_buffer_params:
            # Constant blocks (resident params): double-buffering buys nothing.
            full_spec = lambda shp: pl.BlockSpec(shp, lambda i: (0, 0),
                                                 pipeline_mode=pl.Buffered(1))
        else:
            full_spec = lambda shp: pl.BlockSpec(shp, lambda i: (0, 0))
        return pl.pallas_call(
            kernel,
            out_shape=jax.ShapeDtypeStruct((N_pad, Dt), text.dtype),
            grid_spec=pl.GridSpec(
                grid=(N_pad // br,),
                in_specs=[
                    row_spec(Dt), row_spec(Dv), row_spec(Da),
                    full_spec((Dt, Do)), full_spec((Dv, Do)), full_spec((Da, Do)),
                    full_spec((6, Dt)),
                ],
                out_specs=pl.BlockSpec((br, Dt), lambda i: (i, 0)),
            ),
            compiler_params=pltpu.CompilerParams(
                dimension_semantics=("parallel",),
                vmem_limit_bytes=vmem_limit),
        )(text2, vis2, aco2, wt, wv, wa, pslab)

    try:
        out2 = jax.block_until_ready(run(True))
    except Exception:
        # pl.Buffered(1) / pipeline_mode unsupported on this jax version:
        # fall back to default (double-buffered) parameter blocks.
        out2 = jax.block_until_ready(run(False))

    return out2[:N].reshape(B, S, Dt)


def mag_reference(text, visual, acoustic, params, *, beta_shift=1.0, ln_eps=1e-5,
                  mm_dtype=None):
    """Pure-JAX reference (mirrors the PyTorch forward).

    mm_dtype=None -> full f32 math; mm_dtype=bf16 -> matmul operands quantised
    to bf16 with f32 accumulation (matches the kernel's MXU path)."""
    W_hv, b_hv = params["W_hv"]
    W_ha, b_ha = params["W_ha"]
    W_v, b_v = params["W_v"]
    W_a, b_a = params["W_a"]
    ln_g, ln_b = params["LN"]

    def lin(x, W, b):
        if mm_dtype is not None:
            x = x.astype(mm_dtype)
            W = W.astype(mm_dtype)
        return jnp.dot(x, W.T, preferred_element_type=jnp.float32) + b

    weight_v = jax.nn.relu(lin(jnp.concatenate((visual, text), axis=-1), W_hv, b_hv))
    weight_a = jax.nn.relu(lin(jnp.concatenate((acoustic, text), axis=-1), W_ha, b_ha))
    h_m = weight_v * lin(visual, W_v, b_v) + weight_a * lin(acoustic, W_a, b_a)

    em_norm = jnp.linalg.norm(text, axis=-1)
    hm_norm = jnp.linalg.norm(h_m, axis=-1)
    hm_norm = jnp.where(hm_norm == 0, jnp.ones_like(hm_norm), hm_norm)
    thresh = em_norm / (hm_norm + 1e-6) * beta_shift
    alpha = jnp.minimum(thresh, 1.0)[..., None]

    x = alpha * h_m + text
    mean = jnp.mean(x, axis=-1, keepdims=True)
    var = jnp.mean((x - mean) ** 2, axis=-1, keepdims=True)
    return (x - mean) * jax.lax.rsqrt(var + ln_eps) * ln_g + ln_b


def init_params(key, text_dim, video_dim, audio_dim):
    keys = jax.random.split(key, 8)

    def lin(kw, kb, out_d, in_d):
        bound = 1.0 / jnp.sqrt(in_d)
        w = jax.random.uniform(kw, (out_d, in_d), jnp.float32, -bound, bound)
        b = jax.random.uniform(kb, (out_d,), jnp.float32, -bound, bound)
        return w, b

    return {
        "W_hv": lin(keys[0], keys[1], text_dim, video_dim + text_dim),
        "W_ha": lin(keys[2], keys[3], text_dim, audio_dim + text_dim),
        "W_v": lin(keys[4], keys[5], text_dim, video_dim),
        "W_a": lin(keys[6], keys[7], text_dim, audio_dim),
        "LN": (jnp.ones((text_dim,), jnp.float32),
               jnp.zeros((text_dim,), jnp.float32)),
    }


if __name__ == "__main__":
    BETA_SHIFT = 1.0
    key = jax.random.PRNGKey(0)

    # (B, S, text_dim, video_dim, audio_dim); second case exercises row padding.
    for (B, S, TEXT_DIM, VIDEO_DIM, AUDIO_DIM) in [(2, 8, 128, 32, 32),
                                                   (3, 7, 128, 32, 32)]:
        k_t, k_v, k_a, k_p, key = jax.random.split(key, 5)
        text = jax.random.normal(k_t, (B, S, TEXT_DIM), jnp.float32)
        visual = jax.random.normal(k_v, (B, S, VIDEO_DIM), jnp.float32)
        acoustic = jax.random.normal(k_a, (B, S, AUDIO_DIM), jnp.float32)
        params = init_params(k_p, TEXT_DIM, VIDEO_DIM, AUDIO_DIM)

        out = jax.block_until_ready(
            mag_forward(text, visual, acoustic, params, beta_shift=BETA_SHIFT))
        assert out.shape == (B, S, TEXT_DIM)

        # Tight check against a reference that matches the kernel's bf16 MXU path.
        ref_bf = mag_reference(text, visual, acoustic, params,
                               beta_shift=BETA_SHIFT, mm_dtype=jnp.bfloat16)
        err_bf = jnp.max(jnp.abs(out - ref_bf))
        assert jnp.allclose(out, ref_bf, atol=2e-2, rtol=2e-2), \
            f"max abs err vs bf16-matched ref {err_bf}"

        # Loose sanity check against the full-f32 PyTorch-equivalent reference
        # (bounds the bf16 MXU quantisation error).
        ref_f32 = mag_reference(text, visual, acoustic, params, beta_shift=BETA_SHIFT)
        err_f32 = jnp.max(jnp.abs(out - ref_f32))
        assert err_f32 < 0.1, f"max abs err vs f32 ref {err_f32}"

    print("KERNEL_OK")
</pallas_src>

<mosaic_0001>
module attributes {stable_mosaic.version = 11 : i64} {
  func.func @_mag_kernel(%arg0: i32, %arg1: memref<8x128xf32, #tpu.memory_space<vmem>>, %arg2: memref<8x32xf32, #tpu.memory_space<vmem>>, %arg3: memref<8x32xf32, #tpu.memory_space<vmem>>, %arg4: memref<128x256xbf16, #tpu.memory_space<vmem>>, %arg5: memref<32x256xbf16, #tpu.memory_space<vmem>>, %arg6: memref<32x256xbf16, #tpu.memory_space<vmem>>, %arg7: memref<6x128xf32, #tpu.memory_space<vmem>>, %arg8: memref<8x128xf32, #tpu.memory_space<vmem>>) attributes {dimension_semantics = [#tpu.dimension_semantics<parallel>], iteration_bounds = array<i64: 2>, scalar_prefetch = 0 : i64, scratch_operands = 0 : i64, tpu.core_type = #tpu.core_type<tc>, window_params = [{transform_indices = @transform_0, window_bounds = array<i64: 8, 128>}, {transform_indices = @transform_1, window_bounds = array<i64: 8, 32>}, {transform_indices = @transform_2, window_bounds = array<i64: 8, 32>}, {pipeline_mode = #tpu.pipeline_mode<synchronous>, transform_indices = @transform_3, window_bounds = array<i64: 128, 256>}, {pipeline_mode = #tpu.pipeline_mode<synchronous>, transform_indices = @transform_4, window_bounds = array<i64: 32, 256>}, {pipeline_mode = #tpu.pipeline_mode<synchronous>, transform_indices = @transform_5, window_bounds = array<i64: 32, 256>}, {pipeline_mode = #tpu.pipeline_mode<synchronous>, transform_indices = @transform_6, window_bounds = array<i64: 6, 128>}, {transform_indices = @transform_7, window_bounds = array<i64: 8, 128>}]} {
    %c0 = arith.constant 0 : index
    %c0_0 = arith.constant 0 : index
    %0 = vector.load %arg1[%c0, %c0_0] : memref<8x128xf32, #tpu.memory_space<vmem>>, vector<8x128xf32>
    %c0_1 = arith.constant 0 : index
    %c0_2 = arith.constant 0 : index
    %1 = vector.load %arg1[%c0_1, %c0_2] : memref<8x128xf32, #tpu.memory_space<vmem>>, vector<8x128xf32>
    %2 = arith.truncf %1 : vector<8x128xf32> to vector<8x128xbf16>
    %c0_3 = arith.constant 0 : index
    %c0_4 = arith.constant 0 : index
    %3 = vector.load %arg4[%c0_3, %c0_4] : memref<128x256xbf16, #tpu.memory_space<vmem>>, vector<128x256xbf16>
    %cst = arith.constant dense<0.000000e+00> : vector<8x256xf32>
    %4 = tpu.matmul %2, %3, %cst {dimension_numbers = #tpu.dot_dimension_numbers<[1], [0], [0], [1], [0, 0, 1, 1], [], []>} : vector<8x128xbf16>, vector<128x256xbf16>, vector<8x256xf32> -> vector<8x256xf32>
    %c0_5 = arith.constant 0 : index
    %c0_6 = arith.constant 0 : index
    %5 = vector.load %arg2[%c0_5, %c0_6] : memref<8x32xf32, #tpu.memory_space<vmem>>, vector<8x32xf32>
    %6 = arith.truncf %5 : vector<8x32xf32> to vector<8x32xbf16>
    %c0_7 = arith.constant 0 : index
    %c0_8 = arith.constant 0 : index
    %7 = vector.load %arg5[%c0_7, %c0_8] : memref<32x256xbf16, #tpu.memory_space<vmem>>, vector<32x256xbf16>
    %cst_9 = arith.constant dense<0.000000e+00> : vector<8x256xf32>
    %8 = tpu.matmul %6, %7, %cst_9 {dimension_numbers = #tpu.dot_dimension_numbers<[1], [0], [0], [1], [0, 0, 1, 1], [], []>} : vector<8x32xbf16>, vector<32x256xbf16>, vector<8x256xf32> -> vector<8x256xf32>
    %c0_10 = arith.constant 0 : index
    %c0_11 = arith.constant 0 : index
    %9 = vector.load %arg3[%c0_10, %c0_11] : memref<8x32xf32, #tpu.memory_space<vmem>>, vector<8x32xf32>
    %10 = arith.truncf %9 : vector<8x32xf32> to vector<8x32xbf16>
    %c0_12 = arith.constant 0 : index
    %c0_13 = arith.constant 0 : index
    %11 = vector.load %arg6[%c0_12, %c0_13] : memref<32x256xbf16, #tpu.memory_space<vmem>>, vector<32x256xbf16>
    %cst_14 = arith.constant dense<0.000000e+00> : vector<8x256xf32>
    %12 = tpu.matmul %10, %11, %cst_14 {dimension_numbers = #tpu.dot_dimension_numbers<[1], [0], [0], [1], [0, 0, 1, 1], [], []>} : vector<8x32xbf16>, vector<32x256xbf16>, vector<8x256xf32> -> vector<8x256xf32>
    %c0_15 = arith.constant 0 : index
    %c0_16 = arith.constant 0 : index
    %13 = vector.load %arg7[%c0_15, %c0_16] : memref<6x128xf32, #tpu.memory_space<vmem>>, vector<1x128xf32>
    %c1 = arith.constant 1 : index
    %c0_17 = arith.constant 0 : index
    %14 = vector.load %arg7[%c1, %c0_17] : memref<6x128xf32, #tpu.memory_space<vmem>>, vector<1x128xf32>
    %c2 = arith.constant 2 : index
    %c0_18 = arith.constant 0 : index
    %15 = vector.load %arg7[%c2, %c0_18] : memref<6x128xf32, #tpu.memory_space<vmem>>, vector<1x128xf32>
    %c3 = arith.constant 3 : index
    %c0_19 = arith.constant 0 : index
    %16 = vector.load %arg7[%c3, %c0_19] : memref<6x128xf32, #tpu.memory_space<vmem>>, vector<1x128xf32>
    %c4 = arith.constant 4 : index
    %c0_20 = arith.constant 0 : index
    %17 = vector.load %arg7[%c4, %c0_20] : memref<6x128xf32, #tpu.memory_space<vmem>>, vector<1x128xf32>
    %c5 = arith.constant 5 : index
    %c0_21 = arith.constant 0 : index
    %18 = vector.load %arg7[%c5, %c0_21] : memref<6x128xf32, #tpu.memory_space<vmem>>, vector<1x128xf32>
    %19 = vector.extract_strided_slice %4 {offsets = [0, 0], sizes = [8, 128], strides = [1, 1]} : vector<8x256xf32> to vector<8x128xf32>
    %20 = vector.extract_strided_slice %8 {offsets = [0, 0], sizes = [8, 128], strides = [1, 1]} : vector<8x256xf32> to vector<8x128xf32>
    %21 = arith.addf %19, %20 : vector<8x128xf32>
    %22 = vector.broadcast %13 : vector<1x128xf32> to vector<8x128xf32>
    %23 = arith.addf %21, %22 : vector<8x128xf32>
    %cst_22 = arith.constant 0.000000e+00 : f32
    %24 = vector.broadcast %cst_22 : f32 to vector<8x128xf32>
    %25 = arith.maximumf %23, %24 : vector<8x128xf32>
    %26 = vector.extract_strided_slice %4 {offsets = [0, 128], sizes = [8, 128], strides = [1, 1]} : vector<8x256xf32> to vector<8x128xf32>
    %27 = vector.extract_strided_slice %12 {offsets = [0, 0], sizes = [8, 128], strides = [1, 1]} : vector<8x256xf32> to vector<8x128xf32>
    %28 = arith.addf %26, %27 : vector<8x128xf32>
    %29 = vector.broadcast %14 : vector<1x128xf32> to vector<8x128xf32>
    %30 = arith.addf %28, %29 : vector<8x128xf32>
    %cst_23 = arith.constant 0.000000e+00 : f32
    %31 = vector.broadcast %cst_23 : f32 to vector<8x128xf32>
    %32 = arith.maximumf %30, %31 : vector<8x128xf32>
    %33 = vector.extract_strided_slice %8 {offsets = [0, 128], sizes = [8, 128], strides = [1, 1]} : vector<8x256xf32> to vector<8x128xf32>
    %34 = vector.broadcast %15 : vector<1x128xf32> to vector<8x128xf32>
    %35 = arith.addf %33, %34 : vector<8x128xf32>
    %36 = vector.extract_strided_slice %12 {offsets = [0, 128], sizes = [8, 128], strides = [1, 1]} : vector<8x256xf32> to vector<8x128xf32>
    %37 = vector.broadcast %16 : vector<1x128xf32> to vector<8x128xf32>
    %38 = arith.addf %36, %37 : vector<8x128xf32>
    %39 = arith.mulf %25, %35 : vector<8x128xf32>
    %40 = arith.mulf %32, %38 : vector<8x128xf32>
    %41 = arith.addf %39, %40 : vector<8x128xf32>
    %42 = arith.mulf %0, %0 : vector<8x128xf32>
    %cst_24 = arith.constant dense<0.000000e+00> : vector<8xf32>
    %43 = vector.multi_reduction <add>, %42, %cst_24 [1] : vector<8x128xf32> to vector<8xf32>
    %44 = vector.shape_cast %43 : vector<8xf32> to vector<8x1xf32>
    %45 = math.sqrt %44 : vector<8x1xf32>
    %46 = arith.mulf %41, %41 : vector<8x128xf32>
    %cst_25 = arith.constant dense<0.000000e+00> : vector<8xf32>
    %47 = vector.multi_reduction <add>, %46, %cst_25 [1] : vector<8x128xf32> to vector<8xf32>
    %48 = vector.shape_cast %47 : vector<8xf32> to vector<8x1xf32>
    %49 = math.sqrt %48 : vector<8x1xf32>
    %cst_26 = arith.constant 0.000000e+00 : f32
    %50 = vector.broadcast %cst_26 : f32 to vector<8x1xf32>
    %51 = arith.cmpf oeq, %49, %50 : vector<8x1xf32>
    %cst_27 = arith.constant 1.000000e+00 : f32
    %52 = vector.broadcast %cst_27 : f32 to vector<8x1xf32>
    %53 = arith.select %51, %52, %49 : vector<8x1xi1>, vector<8x1xf32>
    %cst_28 = arith.constant 9.99999997E-7 : f32
    %54 = vector.broadcast %cst_28 : f32 to vector<8x1xf32>
    %55 = arith.addf %53, %54 : vector<8x1xf32>
    %56 = tpu.reciprocal %55 {approx = true} : vector<8x1xf32> -> vector<8x1xf32>
    %57 = arith.mulf %45, %56 : vector<8x1xf32>
    %cst_29 = arith.constant 1.000000e+00 : f32
    %58 = vector.broadcast %cst_29 : f32 to vector<8x1xf32>
    %59 = arith.mulf %57, %58 : vector<8x1xf32>
    %cst_30 = arith.constant 1.000000e+00 : f32
    %60 = vector.broadcast %cst_30 : f32 to vector<8x1xf32>
    %61 = arith.minimumf %59, %60 : vector<8x1xf32>
    %62 = vector.broadcast %61 : vector<8x1xf32> to vector<8x128xf32>
    %63 = arith.mulf %62, %41 : vector<8x128xf32>
    %64 = arith.addf %63, %0 : vector<8x128xf32>
    %cst_31 = arith.constant dense<0.000000e+00> : vector<8xf32>
    %65 = vector.multi_reduction <add>, %64, %cst_31 [1] : vector<8x128xf32> to vector<8xf32>
    %66 = vector.shape_cast %65 : vector<8xf32> to vector<8x1xf32>
    %cst_32 = arith.constant 1.280000e+02 : f32
    %67 = vector.broadcast %cst_32 : f32 to vector<8x1xf32>
    %68 = arith.divf %66, %67 : vector<8x1xf32>
    %69 = vector.broadcast %68 : vector<8x1xf32> to vector<8x128xf32>
    %70 = arith.subf %64, %69 : vector<8x128xf32>
    %71 = arith.mulf %70, %70 : vector<8x128xf32>
    %cst_33 = arith.constant dense<0.000000e+00> : vector<8xf32>
    %72 = vector.multi_reduction <add>, %71, %cst_33 [1] : vector<8x128xf32> to vector<8xf32>
    %73 = vector.shape_cast %72 : vector<8xf32> to vector<8x1xf32>
    %cst_34 = arith.constant 1.280000e+02 : f32
    %74 = vector.broadcast %cst_34 : f32 to vector<8x1xf32>
    %75 = arith.divf %73, %74 : vector<8x1xf32>
    %cst_35 = arith.constant 9.99999974E-6 : f32
    %76 = vector.broadcast %cst_35 : f32 to vector<8x1xf32>
    %77 = arith.addf %75, %76 : vector<8x1xf32>
    %78 = math.rsqrt %77 : vector<8x1xf32>
    %79 = vector.broadcast %78 : vector<8x1xf32> to vector<8x128xf32>
    %80 = arith.mulf %70, %79 : vector<8x128xf32>
    %81 = vector.broadcast %17 : vector<1x128xf32> to vector<8x128xf32>
    %82 = arith.mulf %80, %81 : vector<8x128xf32>
    %83 = vector.broadcast %18 : vector<1x128xf32> to vector<8x128xf32>
    %84 = arith.addf %82, %83 : vector<8x128xf32>
    %c0_36 = arith.constant 0 : index
    %c0_37 = arith.constant 0 : index
    %85 = vector.load %arg8[%c0_36, %c0_37] : memref<8x128xf32, #tpu.memory_space<vmem>>, vector<8x128xf32>
    tpu.vector_store %arg8[%c0_36, %c0_37], %84 {strides = array<i32>} : memref<8x128xf32, #tpu.memory_space<vmem>>, vector<8x128xf32>,
    return
  }
  func.func @transform_0(%arg0: i32) -> (i32, i32) {
    %c0_i32 = arith.constant 0 : i32
    %c0_i32_0 = arith.constant 0 : i32
    return %arg0, %c0_i32 : i32, i32
  }
  func.func @transform_1(%arg0: i32) -> (i32, i32) {
    %c0_i32 = arith.constant 0 : i32
    %c0_i32_0 = arith.constant 0 : i32
    return %arg0, %c0_i32 : i32, i32
  }
  func.func @transform_2(%arg0: i32) -> (i32, i32) {
    %c0_i32 = arith.constant 0 : i32
    %c0_i32_0 = arith.constant 0 : i32
    return %arg0, %c0_i32 : i32, i32
  }
  func.func @transform_3(%arg0: i32) -> (i32, i32) {
    %c0_i32 = arith.constant 0 : i32
    %c0_i32_0 = arith.constant 0 : i32
    %c0_i32_1 = arith.constant 0 : i32
    return %c0_i32, %c0_i32_0 : i32, i32
  }
  func.func @transform_4(%arg0: i32) -> (i32, i32) {
    %c0_i32 = arith.constant 0 : i32
    %c0_i32_0 = arith.constant 0 : i32
    %c0_i32_1 = arith.constant 0 : i32
    return %c0_i32, %c0_i32_0 : i32, i32
  }
  func.func @transform_5(%arg0: i32) -> (i32, i32) {
    %c0_i32 = arith.constant 0 : i32
    %c0_i32_0 = arith.constant 0 : i32
    %c0_i32_1 = arith.constant 0 : i32
    return %c0_i32, %c0_i32_0 : i32, i32
  }
  func.func @transform_6(%arg0: i32) -> (i32, i32) {
    %c0_i32 = arith.constant 0 : i32
    %c0_i32_0 = arith.constant 0 : i32
    %c0_i32_1 = arith.constant 0 : i32
    return %c0_i32, %c0_i32_0 : i32, i32
  }
  func.func @transform_7(%arg0: i32) -> (i32, i32) {
    %c0_i32 = arith.constant 0 : i32
    %c0_i32_0 = arith.constant 0 : i32
    return %arg0, %c0_i32 : i32, i32
  }
}

module attributes {stable_mosaic.version = 11 : i64} {
  func.func @_mag_kernel(%arg0: i32, %arg1: memref<8x128xf32, #tpu.memory_space<vmem>>, %arg2: memref<8x32xf32, #tpu.memory_space<vmem>>, %arg3: memref<8x32xf32, #tpu.memory_space<vmem>>, %arg4: memref<128x256xbf16, #tpu.memory_space<vmem>>, %arg5: memref<32x256xbf16, #tpu.memory_space<vmem>>, %arg6: memref<32x256xbf16, #tpu.memory_space<vmem>>, %arg7: memref<6x128xf32, #tpu.memory_space<vmem>>, %arg8: memref<8x128xf32, #tpu.memory_space<vmem>>) attributes {dimension_semantics = [#tpu.dimension_semantics<parallel>], iteration_bounds = array<i64: 2>, scalar_prefetch = 0 : i64, scratch_operands = 0 : i64, tpu.core_type = #tpu.core_type<tc>, window_params = [{transform_indices = @transform_0, window_bounds = array<i64: 8, 128>}, {transform_indices = @transform_1, window_bounds = array<i64: 8, 32>}, {transform_indices = @transform_2, window_bounds = array<i64: 8, 32>}, {pipeline_mode = #tpu.pipeline_mode<synchronous>, transform_indices = @transform_3, window_bounds = array<i64: 128, 256>}, {pipeline_mode = #tpu.pipeline_mode<synchronous>, transform_indices = @transform_4, window_bounds = array<i64: 32, 256>}, {pipeline_mode = #tpu.pipeline_mode<synchronous>, transform_indices = @transform_5, window_bounds = array<i64: 32, 256>}, {pipeline_mode = #tpu.pipeline_mode<synchronous>, transform_indices = @transform_6, window_bounds = array<i64: 6, 128>}, {transform_indices = @transform_7, window_bounds = array<i64: 8, 128>}]} {
    %c0 = arith.constant 0 : index
    %c0_0 = arith.constant 0 : index
    %0 = vector.load %arg1[%c0, %c0_0] : memref<8x128xf32, #tpu.memory_space<vmem>>, vector<8x128xf32>
    %c0_1 = arith.constant 0 : index
    %c0_2 = arith.constant 0 : index
    %1 = vector.load %arg1[%c0_1, %c0_2] : memref<8x128xf32, #tpu.memory_space<vmem>>, vector<8x128xf32>
    %2 = arith.truncf %1 : vector<8x128xf32> to vector<8x128xbf16>
    %c0_3 = arith.constant 0 : index
    %c0_4 = arith.constant 0 : index
    %3 = vector.load %arg4[%c0_3, %c0_4] : memref<128x256xbf16, #tpu.memory_space<vmem>>, vector<128x256xbf16>
    %cst = arith.constant dense<0.000000e+00> : vector<8x256xf32>
    %4 = tpu.matmul %2, %3, %cst {dimension_numbers = #tpu.dot_dimension_numbers<[1], [0], [0], [1], [0, 0, 1, 1], [], []>} : vector<8x128xbf16>, vector<128x256xbf16>, vector<8x256xf32> -> vector<8x256xf32>
    %c0_5 = arith.constant 0 : index
    %c0_6 = arith.constant 0 : index
    %5 = vector.load %arg2[%c0_5, %c0_6] : memref<8x32xf32, #tpu.memory_space<vmem>>, vector<8x32xf32>
    %6 = arith.truncf %5 : vector<8x32xf32> to vector<8x32xbf16>
    %c0_7 = arith.constant 0 : index
    %c0_8 = arith.constant 0 : index
    %7 = vector.load %arg5[%c0_7, %c0_8] : memref<32x256xbf16, #tpu.memory_space<vmem>>, vector<32x256xbf16>
    %cst_9 = arith.constant dense<0.000000e+00> : vector<8x256xf32>
    %8 = tpu.matmul %6, %7, %cst_9 {dimension_numbers = #tpu.dot_dimension_numbers<[1], [0], [0], [1], [0, 0, 1, 1], [], []>} : vector<8x32xbf16>, vector<32x256xbf16>, vector<8x256xf32> -> vector<8x256xf32>
    %c0_10 = arith.constant 0 : index
    %c0_11 = arith.constant 0 : index
    %9 = vector.load %arg3[%c0_10, %c0_11] : memref<8x32xf32, #tpu.memory_space<vmem>>, vector<8x32xf32>
    %10 = arith.truncf %9 : vector<8x32xf32> to vector<8x32xbf16>
    %c0_12 = arith.constant 0 : index
    %c0_13 = arith.constant 0 : index
    %11 = vector.load %arg6[%c0_12, %c0_13] : memref<32x256xbf16, #tpu.memory_space<vmem>>, vector<32x256xbf16>
    %cst_14 = arith.constant dense<0.000000e+00> : vector<8x256xf32>
    %12 = tpu.matmul %10, %11, %cst_14 {dimension_numbers = #tpu.dot_dimension_numbers<[1], [0], [0], [1], [0, 0, 1, 1], [], []>} : vector<8x32xbf16>, vector<32x256xbf16>, vector<8x256xf32> -> vector<8x256xf32>
    %c0_15 = arith.constant 0 : index
    %c0_16 = arith.constant 0 : index
    %13 = vector.load %arg7[%c0_15, %c0_16] : memref<6x128xf32, #tpu.memory_space<vmem>>, vector<1x128xf32>
    %c1 = arith.constant 1 : index
    %c0_17 = arith.constant 0 : index
    %14 = vector.load %arg7[%c1, %c0_17] : memref<6x128xf32, #tpu.memory_space<vmem>>, vector<1x128xf32>
    %c2 = arith.constant 2 : index
    %c0_18 = arith.constant 0 : index
    %15 = vector.load %arg7[%c2, %c0_18] : memref<6x128xf32, #tpu.memory_space<vmem>>, vector<1x128xf32>
    %c3 = arith.constant 3 : index
    %c0_19 = arith.constant 0 : index
    %16 = vector.load %arg7[%c3, %c0_19] : memref<6x128xf32, #tpu.memory_space<vmem>>, vector<1x128xf32>
    %c4 = arith.constant 4 : index
    %c0_20 = arith.constant 0 : index
    %17 = vector.load %arg7[%c4, %c0_20] : memref<6x128xf32, #tpu.memory_space<vmem>>, vector<1x128xf32>
    %c5 = arith.constant 5 : index
    %c0_21 = arith.constant 0 : index
    %18 = vector.load %arg7[%c5, %c0_21] : memref<6x128xf32, #tpu.memory_space<vmem>>, vector<1x128xf32>
    %19 = vector.extract_strided_slice %4 {offsets = [0, 0], sizes = [8, 128], strides = [1, 1]} : vector<8x256xf32> to vector<8x128xf32>
    %20 = vector.extract_strided_slice %8 {offsets = [0, 0], sizes = [8, 128], strides = [1, 1]} : vector<8x256xf32> to vector<8x128xf32>
    %21 = arith.addf %19, %20 : vector<8x128xf32>
    %22 = vector.broadcast %13 : vector<1x128xf32> to vector<8x128xf32>
    %23 = arith.addf %21, %22 : vector<8x128xf32>
    %cst_22 = arith.constant 0.000000e+00 : f32
    %24 = vector.broadcast %cst_22 : f32 to vector<8x128xf32>
    %25 = arith.maximumf %23, %24 : vector<8x128xf32>
    %26 = vector.extract_strided_slice %4 {offsets = [0, 128], sizes = [8, 128], strides = [1, 1]} : vector<8x256xf32> to vector<8x128xf32>
    %27 = vector.extract_strided_slice %12 {offsets = [0, 0], sizes = [8, 128], strides = [1, 1]} : vector<8x256xf32> to vector<8x128xf32>
    %28 = arith.addf %26, %27 : vector<8x128xf32>
    %29 = vector.broadcast %14 : vector<1x128xf32> to vector<8x128xf32>
    %30 = arith.addf %28, %29 : vector<8x128xf32>
    %cst_23 = arith.constant 0.000000e+00 : f32
    %31 = vector.broadcast %cst_23 : f32 to vector<8x128xf32>
    %32 = arith.maximumf %30, %31 : vector<8x128xf32>
    %33 = vector.extract_strided_slice %8 {offsets = [0, 128], sizes = [8, 128], strides = [1, 1]} : vector<8x256xf32> to vector<8x128xf32>
    %34 = vector.broadcast %15 : vector<1x128xf32> to vector<8x128xf32>
    %35 = arith.addf %33, %34 : vector<8x128xf32>
    %36 = vector.extract_strided_slice %12 {offsets = [0, 128], sizes = [8, 128], strides = [1, 1]} : vector<8x256xf32> to vector<8x128xf32>
    %37 = vector.broadcast %16 : vector<1x128xf32> to vector<8x128xf32>
    %38 = arith.addf %36, %37 : vector<8x128xf32>
    %39 = arith.mulf %25, %35 : vector<8x128xf32>
    %40 = arith.mulf %32, %38 : vector<8x128xf32>
    %41 = arith.addf %39, %40 : vector<8x128xf32>
    %42 = arith.mulf %0, %0 : vector<8x128xf32>
    %cst_24 = arith.constant dense<0.000000e+00> : vector<8xf32>
    %43 = vector.multi_reduction <add>, %42, %cst_24 [1] : vector<8x128xf32> to vector<8xf32>
    %44 = vector.shape_cast %43 : vector<8xf32> to vector<8x1xf32>
    %45 = math.sqrt %44 : vector<8x1xf32>
    %46 = arith.mulf %41, %41 : vector<8x128xf32>
    %cst_25 = arith.constant dense<0.000000e+00> : vector<8xf32>
    %47 = vector.multi_reduction <add>, %46, %cst_25 [1] : vector<8x128xf32> to vector<8xf32>
    %48 = vector.shape_cast %47 : vector<8xf32> to vector<8x1xf32>
    %49 = math.sqrt %48 : vector<8x1xf32>
    %cst_26 = arith.constant 0.000000e+00 : f32
    %50 = vector.broadcast %cst_26 : f32 to vector<8x1xf32>
    %51 = arith.cmpf oeq, %49, %50 : vector<8x1xf32>
    %cst_27 = arith.constant 1.000000e+00 : f32
    %52 = vector.broadcast %cst_27 : f32 to vector<8x1xf32>
    %53 = arith.select %51, %52, %49 : vector<8x1xi1>, vector<8x1xf32>
    %cst_28 = arith.constant 9.99999997E-7 : f32
    %54 = vector.broadcast %cst_28 : f32 to vector<8x1xf32>
    %55 = arith.addf %53, %54 : vector<8x1xf32>
    %56 = tpu.reciprocal %55 {approx = true} : vector<8x1xf32> -> vector<8x1xf32>
    %57 = arith.mulf %45, %56 : vector<8x1xf32>
    %cst_29 = arith.constant 1.000000e+00 : f32
    %58 = vector.broadcast %cst_29 : f32 to vector<8x1xf32>
    %59 = arith.mulf %57, %58 : vector<8x1xf32>
    %cst_30 = arith.constant 1.000000e+00 : f32
    %60 = vector.broadcast %cst_30 : f32 to vector<8x1xf32>
    %61 = arith.minimumf %59, %60 : vector<8x1xf32>
    %62 = vector.broadcast %61 : vector<8x1xf32> to vector<8x128xf32>
    %63 = arith.mulf %62, %41 : vector<8x128xf32>
    %64 = arith.addf %63, %0 : vector<8x128xf32>
    %cst_31 = arith.constant dense<0.000000e+00> : vector<8xf32>
    %65 = vector.multi_reduction <add>, %64, %cst_31 [1] : vector<8x128xf32> to vector<8xf32>
    %66 = vector.shape_cast %65 : vector<8xf32> to vector<8x1xf32>
    %cst_32 = arith.constant 1.280000e+02 : f32
    %67 = vector.broadcast %cst_32 : f32 to vector<8x1xf32>
    %68 = arith.divf %66, %67 : vector<8x1xf32>
    %69 = vector.broadcast %68 : vector<8x1xf32> to vector<8x128xf32>
    %70 = arith.subf %64, %69 : vector<8x128xf32>
    %71 = arith.mulf %70, %70 : vector<8x128xf32>
    %cst_33 = arith.constant dense<0.000000e+00> : vector<8xf32>
    %72 = vector.multi_reduction <add>, %71, %cst_33 [1] : vector<8x128xf32> to vector<8xf32>
    %73 = vector.shape_cast %72 : vector<8xf32> to vector<8x1xf32>
    %cst_34 = arith.constant 1.280000e+02 : f32
    %74 = vector.broadcast %cst_34 : f32 to vector<8x1xf32>
    %75 = arith.divf %73, %74 : vector<8x1xf32>
    %cst_35 = arith.constant 9.99999974E-6 : f32
    %76 = vector.broadcast %cst_35 : f32 to vector<8x1xf32>
    %77 = arith.addf %75, %76 : vector<8x1xf32>
    %78 = math.rsqrt %77 : vector<8x1xf32>
    %79 = vector.broadcast %78 : vector<8x1xf32> to vector<8x128xf32>
    %80 = arith.mulf %70, %79 : vector<8x128xf32>
    %81 = vector.broadcast %17 : vector<1x128xf32> to vector<8x128xf32>
    %82 = arith.mulf %80, %81 : vector<8x128xf32>
    %83 = vector.broadcast %18 : vector<1x128xf32> to vector<8x128xf32>
    %84 = arith.addf %82, %83 : vector<8x128xf32>
    %c0_36 = arith.constant 0 : index
    %c0_37 = arith.constant 0 : index
    %85 = vector.load %arg8[%c0_36, %c0_37] : memref<8x128xf32, #tpu.memory_space<vmem>>, vector<8x128xf32>
    tpu.vector_store %arg8[%c0_36, %c0_37], %84 {strides = array<i32>} : memref<8x128xf32, #tpu.memory_space<vmem>>, vector<8x128xf32>,
    return
  }
  func.func @transform_0(%arg0: i32) -> (i32, i32) {
    %c0_i32 = arith.constant 0 : i32
    %c0_i32_0 = arith.constant 0 : i32
    return %arg0, %c0_i32 : i32, i32
  }
  func.func @transform_1(%arg0: i32) -> (i32, i32) {
    %c0_i32 = arith.constant 0 : i32
    %c0_i32_0 = arith.constant 0 : i32
    return %arg0, %c0_i32 : i32, i32
  }
  func.func @transform_2(%arg0: i32) -> (i32, i32) {
    %c0_i32 = arith.constant 0 : i32
    %c0_i32_0 = arith.constant 0 : i32
    return %arg0, %c0_i32 : i32, i32
  }
  func.func @transform_3(%arg0: i32) -> (i32, i32) {
    %c0_i32 = arith.constant 0 : i32
    %c0_i32_0 = arith.constant 0 : i32
    %c0_i32_1 = arith.constant 0 : i32
    return %c0_i32, %c0_i32_0 : i32, i32
  }
  func.func @transform_4(%arg0: i32) -> (i32, i32) {
    %c0_i32 = arith.constant 0 : i32
    %c0_i32_0 = arith.constant 0 : i32
    %c0_i32_1 = arith.constant 0 : i32
    return %c0_i32, %c0_i32_0 : i32, i32
  }
  func.func @transform_5(%arg0: i32) -> (i32, i32) {
    %c0_i32 = arith.constant 0 : i32
    %c0_i32_0 = arith.constant 0 : i32
    %c0_i32_1 = arith.constant 0 : i32
    return %c0_i32, %c0_i32_0 : i32, i32
  }
  func.func @transform_6(%arg0: i32) -> (i32, i32) {
    %c0_i32 = arith.constant 0 : i32
    %c0_i32_0 = arith.constant 0 : i32
    %c0_i32_1 = arith.constant 0 : i32
    return %c0_i32, %c0_i32_0 : i32, i32
  }
  func.func @transform_7(%arg0: i32) -> (i32, i32) {
    %c0_i32 = arith.constant 0 : i32
    %c0_i32_0 = arith.constant 0 : i32
    return %arg0, %c0_i32 : i32, i32
  }
}

</mosaic_0001>

<llo_original>
// kernel: tpu_custom_call.1
$region0: #{tpu_custom_call.1}
  #allocation0 [shape = 'u32[]', space=smem, size = 0x4, offset = 0x4, fixed_abs, tag = 'smem constant byte address 0x4 - core index']
  #allocation1 [shape = 'u32[144,128]{1,0:T(1,128)}', space=vmem, size = 0x12000, scoped, tag = 'internal scratch']
  %s0 = inlined_call_operand.hbm [shape: f32[16,128], index: 0, kind: input, shape index: {}]
  %s1 = inlined_call_operand.hbm [shape: f32[16,32], index: 1, kind: input, shape index: {}]
  %s2 = inlined_call_operand.hbm [shape: f32[16,32], index: 2, kind: input, shape index: {}]
  %s3 = inlined_call_operand.hbm [shape: bf16[128,256], index: 3, kind: input, shape index: {}]
  %s4 = inlined_call_operand.hbm [shape: bf16[32,256], index: 4, kind: input, shape index: {}]
  %s5 = inlined_call_operand.hbm [shape: bf16[32,256], index: 5, kind: input, shape index: {}]
  %s6 = inlined_call_operand.vmem [shape: f32[6,128], index: 6, kind: input, shape index: {}]
  %s7 = inlined_call_operand.hbm [shape: f32[16,128], index: 7, kind: output, shape index: {}]
  %s8 = sld [smem:[#allocation0]]
  $region85: #{tpu_custom_call.1} parent=0
    _
  %s10 = ssub.s32 1, %s8
  %s11 = scalar_select 0, %s10, %s8
  $region1: #{tpu_custom_call.1} parent=0
    #allocation2 [shape = 'u8[8192]{0}', space=vmem, size = 0x2000, scoped, tag = 'input window, operand 0']
    #allocation3 [shape = 's32[2]{0}', space=sflag, size = 0x8, scoped, tag = 'scoped memory for tpu_custom_call.1']
    #allocation4 [shape = 's32[2]{0}', space=sflag, size = 0x8, scoped, tag = 'scoped memory for tpu_custom_call.1']
    #allocation5 [shape = 'u8[8192]{0}', space=vmem, size = 0x2000, scoped, tag = 'input window, operand 1']
    #allocation6 [shape = 's32[2]{0}', space=sflag, size = 0x8, scoped, tag = 'scoped memory for tpu_custom_call.1']
    #allocation7 [shape = 'u8[8192]{0}', space=vmem, size = 0x2000, scoped, tag = 'input window, operand 2']
    #allocation8 [shape = 'u8[65536]{0}', space=vmem, size = 0x10000, scoped, tag = 'input window, operand 3, single buffered']
    #allocation9 [shape = 's32[1]{0}', space=sflag, size = 0x4, scoped, tag = 'scoped memory for tpu_custom_call.1']
    #allocation10 [shape = 'u8[16384]{0}', space=vmem, size = 0x4000, scoped, tag = 'input window, operand 4, single buffered']
    #allocation11 [shape = 'u8[16384]{0}', space=vmem, size = 0x4000, scoped, tag = 'input window, operand 5, single buffered']
    #allocation12 [shape = 's32[1]{0}', space=sflag, size = 0x4, scoped, tag = 'scoped memory for tpu_custom_call.1']
    #allocation13 [shape = 'u8[8192]{0}', space=vmem, size = 0x2000, scoped, tag = 'output window, operand 0']
    %12 = vsyncpa [#allocation3], 0
    %s13 = scalar_lea.sflag [#allocation3], 1
    %14 = vsyncpa %s13, 0
    %15 = vsyncpa [#allocation6], 0
    %s16 = scalar_lea.sflag [#allocation6], 1
    %17 = vsyncpa %s16, 0
    %18 = vsyncpa [#allocation9], 0
    %19 = vsyncpa [#allocation12], 0
    %20 = vsyncpa [#allocation4], 0
    %s21 = scalar_lea.sflag [#allocation4], 1
    %22 = vsyncpa %s21, 0
    loop: start=0, step=1, limit=4
    $region2: #{tpu_custom_call.1} parent=1 // loop_pre_header
      _
    $region3: #{tpu_custom_call.1} parent=1 // loop_header
      %s24 = sphi 0, %s28
      %p25 = scmp.ge.s32.totalorder %s24, 4
      %s34 = sphi 0, %s36
      %s37 = sphi 0, %s34
      %s38 = sphi 0, %s37
      %s54 = sphi 0, %s38
      %s60 = sphi 0, %s62
      %s63 = sphi 0, %s60
      %s64 = sphi 0, %s63
      %s80 = sphi 0, %s64
      %s86 = sphi 0, %s88
      %s89 = sphi 0, %s86
      %s90 = sphi 0, %s89
      %s106 = sphi 0, %s90
      %s110 = sphi 0, %s110
      %s112 = sphi 0, %s110
      %s113 = sphi 0, %s112
      %s127 = sphi 0, %s113
      %s131 = sphi 0, %s131
      %s133 = sphi 0, %s131
      %s134 = sphi 0, %s133
      %s148 = sphi 0, %s134
      %s152 = sphi 0, %s152
      %s154 = sphi 0, %s152
      %s155 = sphi 0, %s154
      %s169 = sphi 0, %s155
      %s173 = sphi 0, %s173
      %s175 = sphi 0, %s173
      %s176 = sphi 0, %s175
      %s190 = sphi 0, %s176
      %s196 = sphi 0, %s198
      %s199 = sphi 0, %s196
      %s200 = sphi 0, %s199
      %s216 = sphi 0, %s200
    $region4: #{tpu_custom_call.1} parent=1 // loop_header_branch
      %27 = sbr.rel (%p25) target = $region8
    $region5: #{tpu_custom_call.1} parent=1 // loop_body
      %s29 = ssub.s32 %s24, 1
      %s30 = ssub.s32 %s24, 2
      %s31 = sadd.s32 %s24, 1
      %s32 = ssub.s32 %s24, %s31
      %p33 = scmp.eq.s32.totalorder %s32, 0
      %s35 = sadd.s32 %s34, 1
      %s36 = scalar_select %p33, %s34, %s35
      %p39 = pneg %p33
      %p40 = scmp.eq.s32.totalorder %s24, 1
      %p41 = por %p39, %p40
      %p42 = scmp.ne.s32.totalorder %s34, %s37
      %p43 = scmp.eq.s32.totalorder %s24, 0
      %p44 = por %p42, %p43
      %p45 = scmp.ne.s32.totalorder %s34, %s37
      %p46 = scmp.eq.s32.totalorder %s29, 1
      %p47 = por %p45, %p46
      %p48 = scmp.ne.s32.totalorder %s37, %s38
      %p49 = scmp.eq.s32.totalorder %s29, 0
      %p50 = por %p48, %p49
      %p51 = scmp.ne.s32.totalorder %s37, %s38
      %p52 = scmp.eq.s32.totalorder %s30, 1
      %p53 = por %p51, %p52
      %p55 = scmp.ne.s32.totalorder %s38, %s54
      %p56 = scmp.eq.s32.totalorder %s30, 0
      %p57 = por %p55, %p56
      %s58 = ssub.s32 %s24, %s31
      %p59 = scmp.eq.s32.totalorder %s58, 0
      %s61 = sadd.s32 %s60, 1
      %s62 = scalar_select %p59, %s60, %s61
      %p65 = pneg %p59
      %p66 = scmp.eq.s32.totalorder %s24, 1
      %p67 = por %p65, %p66
      %p68 = scmp.ne.s32.totalorder %s60, %s63
      %p69 = scmp.eq.s32.totalorder %s24, 0
      %p70 = por %p68, %p69
      %p71 = scmp.ne.s32.totalorder %s60, %s63
      %p72 = scmp.eq.s32.totalorder %s29, 1
      %p73 = por %p71, %p72
      %p74 = scmp.ne.s32.totalorder %s63, %s64
      %p75 = scmp.eq.s32.totalorder %s29, 0
      %p76 = por %p74, %p75
      %p77 = scmp.ne.s32.totalorder %s63, %s64
      %p78 = scmp.eq.s32.totalorder %s30, 1
      %p79 = por %p77, %p78
      %p81 = scmp.ne.s32.totalorder %s64, %s80
      %p82 = scmp.eq.s32.totalorder %s30, 0
      %p83 = por %p81, %p82
      %s84 = ssub.s32 %s24, %s31
      %p85 = scmp.eq.s32.totalorder %s84, 0
      %s87 = sadd.s32 %s86, 1
      %s88 = scalar_select %p85, %s86, %s87
      %p91 = pneg %p85
      %p92 = scmp.eq.s32.totalorder %s24, 1
      %p93 = por %p91, %p92
      %p94 = scmp.ne.s32.totalorder %s86, %s89
      %p95 = scmp.eq.s32.totalorder %s24, 0
      %p96 = por %p94, %p95
      %p97 = scmp.ne.s32.totalorder %s86, %s89
      %p98 = scmp.eq.s32.totalorder %s29, 1
      %p99 = por %p97, %p98
      %p100 = scmp.ne.s32.totalorder %s89, %s90
      %p101 = scmp.eq.s32.totalorder %s29, 0
      %p102 = por %p100, %p101
      %p103 = scmp.ne.s32.totalorder %s89, %s90
      %p104 = scmp.eq.s32.totalorder %s30, 1
      %p105 = por %p103, %p104
      %p107 = scmp.ne.s32.totalorder %s90, %s106
      %p108 = scmp.eq.s32.totalorder %s30, 0
      %p109 = por %p107, %p108
      %s111 = sadd.s32 %s110, 1
      %p114 = scmp.eq.s32.totalorder %s24, 1
      %p115 = scmp.ne.s32.totalorder %s110, %s112
      %p116 = scmp.eq.s32.totalorder %s24, 0
      %p117 = por %p115, %p116
      %p118 = scmp.ne.s32.totalorder %s110, %s112
      %p119 = scmp.eq.s32.totalorder %s29, 1
      %p120 = por %p118, %p119
      %p121 = scmp.ne.s32.totalorder %s112, %s113
      %p122 = scmp.eq.s32.totalorder %s29, 0
      %p123 = por %p121, %p122
      %p124 = scmp.ne.s32.totalorder %s112, %s113
      %p125 = scmp.eq.s32.totalorder %s30, 1
      %p126 = por %p124, %p125
      %p128 = scmp.ne.s32.totalorder %s113, %s127
      %p129 = scmp.eq.s32.totalorder %s30, 0
      %p130 = por %p128, %p129
      %s132 = sadd.s32 %s131, 1
      %p135 = scmp.eq.s32.totalorder %s24, 1
      %p136 = scmp.ne.s32.totalorder %s131, %s133
      %p137 = scmp.eq.s32.totalorder %s24, 0
      %p138 = por %p136, %p137
      %p139 = scmp.ne.s32.totalorder %s131, %s133
      %p140 = scmp.eq.s32.totalorder %s29, 1
      %p141 = por %p139, %p140
      %p142 = scmp.ne.s32.totalorder %s133, %s134
      %p143 = scmp.eq.s32.totalorder %s29, 0
      %p144 = por %p142, %p143
      %p145 = scmp.ne.s32.totalorder %s133, %s134
      %p146 = scmp.eq.s32.totalorder %s30, 1
      %p147 = por %p145, %p146
      %p149 = scmp.ne.s32.totalorder %s134, %s148
      %p150 = scmp.eq.s32.totalorder %s30, 0
      %p151 = por %p149, %p150
      %s153 = sadd.s32 %s152, 1
      %p156 = scmp.eq.s32.totalorder %s24, 1
      %p157 = scmp.ne.s32.totalorder %s152, %s154
      %p158 = scmp.eq.s32.totalorder %s24, 0
      %p159 = por %p157, %p158
      %p160 = scmp.ne.s32.totalorder %s152, %s154
      %p161 = scmp.eq.s32.totalorder %s29, 1
      %p162 = por %p160, %p161
      %p163 = scmp.ne.s32.totalorder %s154, %s155
      %p164 = scmp.eq.s32.totalorder %s29, 0
      %p165 = por %p163, %p164
      %p166 = scmp.ne.s32.totalorder %s154, %s155
      %p167 = scmp.eq.s32.totalorder %s30, 1
      %p168 = por %p166, %p167
      %p170 = scmp.ne.s32.totalorder %s155, %s169
      %p171 = scmp.eq.s32.totalorder %s30, 0
      %p172 = por %p170, %p171
      %s174 = sadd.s32 %s173, 1
      %p177 = scmp.eq.s32.totalorder %s24, 1
      %p178 = scmp.ne.s32.totalorder %s173, %s175
      %p179 = scmp.eq.s32.totalorder %s24, 0
      %p180 = por %p178, %p179
      %p181 = scmp.ne.s32.totalorder %s173, %s175
      %p182 = scmp.eq.s32.totalorder %s29, 1
      %p183 = por %p181, %p182
      %p184 = scmp.ne.s32.totalorder %s175, %s176
      %p185 = scmp.eq.s32.totalorder %s29, 0
      %p186 = por %p184, %p185
      %p187 = scmp.ne.s32.totalorder %s175, %s176
      %p188 = scmp.eq.s32.totalorder %s30, 1
      %p189 = por %p187, %p188
      %p191 = scmp.ne.s32.totalorder %s176, %s190
      %p192 = scmp.eq.s32.totalorder %s30, 0
      %p193 = por %p191, %p192
      %s194 = ssub.s32 %s24, %s31
      %p195 = scmp.eq.s32.totalorder %s194, 0
      %s197 = sadd.s32 %s196, 1
      %s198 = scalar_select %p195, %s196, %s197
      %p201 = pneg %p195
      %p202 = scmp.eq.s32.totalorder %s24, 1
      %p203 = por %p201, %p202
      %p204 = scmp.ne.s32.totalorder %s196, %s199
      %p205 = scmp.eq.s32.totalorder %s24, 0
      %p206 = por %p204, %p205
      %p207 = scmp.ne.s32.totalorder %s196, %s199
      %p208 = scmp.eq.s32.totalorder %s29, 1
      %p209 = por %p207, %p208
      %p210 = scmp.ne.s32.totalorder %s199, %s200
      %p211 = scmp.eq.s32.totalorder %s29, 0
      %p212 = por %p210, %p211
      %p213 = scmp.ne.s32.totalorder %s199, %s200
      %p214 = scmp.eq.s32.totalorder %s30, 1
      %p215 = por %p213, %p214
      %p217 = scmp.ne.s32.totalorder %s200, %s216
      %p218 = scmp.eq.s32.totalorder %s30, 0
      %p219 = por %p217, %p218
      %p220 = scmp.le.s32.totalorder 1, %s24
      %p221 = scmp.lt.s32.totalorder %s24, 3
      %p222 = pnand %p220, %p221
      %p223 = pneg %p222
      // Predicated region
      $region9: #{tpu_custom_call.1} parent=5 // pred_check
        _
      $region10: #{tpu_custom_call.1} parent=5 // pred_check_branch
        %225 = sbr.rel (%p222) target = $region12
      $region11: #{tpu_custom_call.1} parent=5 // pred_region
        %s226 = ssub.s32 %s24, 1
        // Predicated region
        $region13: #{tpu_custom_call.1} parent=11 // pred_check
          %p227 = pneg %p123
        $region14: #{tpu_custom_call.1} parent=11 // pred_check_branch
          %229 = sbr.rel (%p227) target = $region16
        $region15: #{tpu_custom_call.1} parent=11 // pred_region
          %s231 = ssub.s32 2048, 2048
          %232 = vsyncadd [#allocation9], %s231
          %s233 = sshll.u32 [#allocation8], 4
          %s234 = int_to_ptr.vmem [resolvable:$true] %s233
          %239 = dma.hbm_to_vmem [thread:$0]  %s3, 2048, %s234, [#allocation9], 128, 128, 8
        $region16: #{tpu_custom_call.1} parent=11 // pred_fallthru
          _
        // Predicated region
        $region17: #{tpu_custom_call.1} parent=11 // pred_check
          %p240 = pneg %p144
        $region18: #{tpu_custom_call.1} parent=11 // pred_check_branch
          %242 = sbr.rel (%p240) target = $region20
        $region19: #{tpu_custom_call.1} parent=11 // pred_region
          %s244 = ssub.s32 512, 512
          %245 = vsyncadd [#allocation9], %s244
          %s246 = sshll.u32 [#allocation10], 4
          %s247 = int_to_ptr.vmem [resolvable:$true] %s246
          %252 = dma.hbm_to_vmem [thread:$0]  %s4, 512, %s247, [#allocation9], 128, 128, 8
        $region20: #{tpu_custom_call.1} parent=11 // pred_fallthru
          _
        // Predicated region
        $region21: #{tpu_custom_call.1} parent=11 // pred_check
          %p253 = pneg %p165
        $region22: #{tpu_custom_call.1} parent=11 // pred_check_branch
          %255 = sbr.rel (%p253) target = $region24
        $region23: #{tpu_custom_call.1} parent=11 // pred_region
          %s257 = ssub.s32 512, 512
          %258 = vsyncadd [#allocation12], %s257
          %s259 = sshll.u32 [#allocation11], 4
          %s260 = int_to_ptr.vmem [resolvable:$true] %s259
          %265 = dma.hbm_to_vmem [thread:$0]  %s5, 512, %s260, [#allocation12], 128, 128, 8
        $region24: #{tpu_custom_call.1} parent=11 // pred_fallthru
          _
        // Predicated region
        $region25: #{tpu_custom_call.1} parent=11 // pred_check
          %p266 = pneg %p186
        $region26: #{tpu_custom_call.1} parent=11 // pred_check_branch
          %268 = sbr.rel (%p266) target = $region28
        $region27: #{tpu_custom_call.1} parent=11 // pred_region
          _
        $region28: #{tpu_custom_call.1} parent=11 // pred_fallthru
          _
      $region12: #{tpu_custom_call.1} parent=5 // pred_fallthru
        _
      %p269 = scmp.lt.s32.totalorder %s24, 2
      // Predicated region
      $region29: #{tpu_custom_call.1} parent=5 // pred_check
        %p270 = pneg %p269
      $region30: #{tpu_custom_call.1} parent=5 // pred_check_branch
        %272 = sbr.rel (%p270) target = $region32
      $region31: #{tpu_custom_call.1} parent=5 // pred_region
        // Predicated region
        $region33: #{tpu_custom_call.1} parent=31 // pred_check
          %p273 = pneg %p44
        $region34: #{tpu_custom_call.1} parent=31 // pred_check_branch
          %275 = sbr.rel (%p273) target = $region36
        $region35: #{tpu_custom_call.1} parent=31 // pred_region
          %s276 = sand.u32 %s34, 1
          %s277 = scalar_lea.sflag [#allocation3], %s276
          %s278 = sand.u32 %s34, 1
          %s279 = smul.addr %s278, 8
          %s280 = scalar_lea.vmem [#allocation2], %s279
          %s282 = ssub.s32 128, 128
          %283 = vsyncadd %s277, %s282
          %s284 = smul.addr %s24, 128
          %s285 = scalar_lea.hbm %s0, %s284
          %s287 = sshll.u32 %s280, 4
          %s288 = int_to_ptr.vmem [resolvable:$true] %s287
          %290 = dma.hbm_to_vmem [thread:$0]  %s285, 128, %s288, %s277
        $region36: #{tpu_custom_call.1} parent=31 // pred_fallthru
          _
        // Predicated region
        $region37: #{tpu_custom_call.1} parent=31 // pred_check
          %p291 = pneg %p70
        $region38: #{tpu_custom_call.1} parent=31 // pred_check_branch
          %293 = sbr.rel (%p291) target = $region40
        $region39: #{tpu_custom_call.1} parent=31 // pred_region
          %s294 = sand.u32 %s24, 1
          %s295 = scalar_lea.sflag [#allocation6], %s294
          %s296 = sand.u32 %s60, 1
          %s297 = smul.addr %s296, 8
          %s298 = scalar_lea.vmem [#allocation5], %s297
          %s300 = ssub.s32 128, 128
          %301 = vsyncadd %s295, %s300
          %s302 = smul.addr %s24, 128
          %s303 = scalar_lea.hbm %s1, %s302
          %s305 = sshll.u32 %s298, 4
          %s306 = int_to_ptr.vmem [resolvable:$true] %s305
          %308 = dma.hbm_to_vmem [thread:$0]  %s303, 128, %s306, %s295
        $region40: #{tpu_custom_call.1} parent=31 // pred_fallthru
          _
        // Predicated region
        $region41: #{tpu_custom_call.1} parent=31 // pred_check
          %p309 = pneg %p96
        $region42: #{tpu_custom_call.1} parent=31 // pred_check_branch
          %311 = sbr.rel (%p309) target = $region44
        $region43: #{tpu_custom_call.1} parent=31 // pred_region
          %s312 = sand.u32 %s24, 1
          %s313 = scalar_lea.sflag [#allocation6], %s312
          %s314 = sand.u32 %s86, 1
          %s315 = smul.addr %s314, 8
          %s316 = scalar_lea.vmem [#allocation7], %s315
          %s318 = ssub.s32 128, 128
          %319 = vsyncadd %s313, %s318
          %s320 = smul.addr %s24, 128
          %s321 = scalar_lea.hbm %s2, %s320
          %s323 = sshll.u32 %s316, 4
          %s324 = int_to_ptr.vmem [resolvable:$true] %s323
          %326 = dma.hbm_to_vmem [thread:$0]  %s321, 128, %s324, %s313
        $region44: #{tpu_custom_call.1} parent=31 // pred_fallthru
          _
      $region32: #{tpu_custom_call.1} parent=5 // pred_fallthru
        _
      %p327 = scmp.le.s32.totalorder 1, %s24
      %p328 = scmp.lt.s32.totalorder %s24, 3
      %p329 = pnand %p327, %p328
      %p330 = pneg %p329
      // Predicated region
      $region45: #{tpu_custom_call.1} parent=5 // pred_check
        _
      $region46: #{tpu_custom_call.1} parent=5 // pred_check_branch
        %332 = sbr.rel (%p329) target = $region48
      $region47: #{tpu_custom_call.1} parent=5 // pred_region
        %s333 = ssub.s32 %s24, 1
        %s334 = sand.u32 %s37, 1
        %s335 = scalar_lea.sflag [#allocation3], %s334
        %s336 = sand.u32 %s37, 1
        %s337 = smul.addr %s336, 8
        %s338 = scalar_lea.vmem [#allocation2], %s337
        // Predicated region
        $region49: #{tpu_custom_call.1} parent=47 // pred_check
          %p339 = pneg %p50
        $region50: #{tpu_custom_call.1} parent=47 // pred_check_branch
          %341 = sbr.rel (%p339) target = $region52
        $region51: #{tpu_custom_call.1} parent=47 // pred_region
          %342 = dma.done %s335, 128
        $region52: #{tpu_custom_call.1} parent=47 // pred_fallthru
          _
        %s343 = sand.u32 %s29, 1
        %s344 = scalar_lea.sflag [#allocation6], %s343
        %s345 = sand.u32 %s63, 1
        %s346 = smul.addr %s345, 8
        %s347 = scalar_lea.vmem [#allocation5], %s346
        // Predicated region
        $region53: #{tpu_custom_call.1} parent=47 // pred_check
          %p348 = pneg %p76
        $region54: #{tpu_custom_call.1} parent=47 // pred_check_branch
          %350 = sbr.rel (%p348) target = $region56
        $region55: #{tpu_custom_call.1} parent=47 // pred_region
          %351 = dma.done %s344, 128
        $region56: #{tpu_custom_call.1} parent=47 // pred_fallthru
          _
        %s352 = sand.u32 %s29, 1
        %s353 = scalar_lea.sflag [#allocation6], %s352
        %s354 = sand.u32 %s89, 1
        %s355 = smul.addr %s354, 8
        %s356 = scalar_lea.vmem [#allocation7], %s355
        // Predicated region
        $region57: #{tpu_custom_call.1} parent=47 // pred_check
          %p357 = pneg %p102
        $region58: #{tpu_custom_call.1} parent=47 // pred_check_branch
          %359 = sbr.rel (%p357) target = $region60
        $region59: #{tpu_custom_call.1} parent=47 // pred_region
          %360 = dma.done %s353, 128
        $region60: #{tpu_custom_call.1} parent=47 // pred_fallthru
          _
        // Predicated region
        $region61: #{tpu_custom_call.1} parent=47 // pred_check
          %p361 = pneg %p123
        $region62: #{tpu_custom_call.1} parent=47 // pred_check_branch
          %363 = sbr.rel (%p361) target = $region64
        $region63: #{tpu_custom_call.1} parent=47 // pred_region
          %364 = dma.done [#allocation9], 2048
        $region64: #{tpu_custom_call.1} parent=47 // pred_fallthru
          _
        // Predicated region
        $region65: #{tpu_custom_call.1} parent=47 // pred_check
          %p365 = pneg %p144
        $region66: #{tpu_custom_call.1} parent=47 // pred_check_branch
          %367 = sbr.rel (%p365) target = $region68
        $region67: #{tpu_custom_call.1} parent=47 // pred_region
          %368 = dma.done [#allocation9], 512
        $region68: #{tpu_custom_call.1} parent=47 // pred_fallthru
          _
        // Predicated region
        $region69: #{tpu_custom_call.1} parent=47 // pred_check
          %p369 = pneg %p165
        $region70: #{tpu_custom_call.1} parent=47 // pred_check_branch
          %371 = sbr.rel (%p369) target = $region72
        $region71: #{tpu_custom_call.1} parent=47 // pred_region
          %372 = dma.done [#allocation12], 512
        $region72: #{tpu_custom_call.1} parent=47 // pred_fallthru
          _
        %s373 = sand.u32 %s37, 1
        %s374 = scalar_lea.sflag [#allocation3], %s373
        %s375 = sand.u32 %s37, 1
        %s376 = smul.addr %s375, 8
        %s377 = scalar_lea.vmem [#allocation2], %s376
        %p378 = pneg %p50
        %p379 = pneg %p47
        %s380 = sand.u32 %s29, 1
        %s381 = scalar_lea.sflag [#allocation6], %s380
        %s382 = sand.u32 %s63, 1
        %s383 = smul.addr %s382, 8
        %s384 = scalar_lea.vmem [#allocation5], %s383
        %p385 = pneg %p76
        %p386 = pneg %p73
        %s387 = sand.u32 %s29, 1
        %s388 = scalar_lea.sflag [#allocation6], %s387
        %s389 = sand.u32 %s89, 1
        %s390 = smul.addr %s389, 8
        %s391 = scalar_lea.vmem [#allocation7], %s390
        %p392 = pneg %p102
        %p393 = pneg %p99
        %p394 = pneg %p123
        %p395 = pneg %p120
        %p396 = pneg %p144
        %p397 = pneg %p141
        %p398 = pneg %p165
        %p399 = pneg %p162
        %p400 = pneg %p186
        %p401 = pneg %p183
        %p402 = pneg %p212
        %p403 = pneg %p209
        %s404 = sand.u32 %s199, 1
        %s405 = scalar_lea.sflag [#allocation4], %s404
        %s406 = sand.u32 %s199, 1
        %s407 = smul.addr %s406, 8
        %s408 = scalar_lea.vmem [#allocation13], %s407
        %v410 = vld [vmem:[%s338] sm:$0xff]
        %v411 = vpack.c.bf16 %v410, %v410
        %v412 = vld [vmem:[#allocation8] sm:$0xff]
        %v413 = vld [vmem:[#allocation8 + $0x8] sm:$0xff]
        %v414 = vld [vmem:[#allocation8 + $0x10] sm:$0xff]
        %v415 = vld [vmem:[#allocation8 + $0x18] sm:$0xff]
        %v416 = vld [vmem:[#allocation8 + $0x20] sm:$0xff]
        %v417 = vld [vmem:[#allocation8 + $0x28] sm:$0xff]
        %v418 = vld [vmem:[#allocation8 + $0x30] sm:$0xff]
        %v419 = vld [vmem:[#allocation8 + $0x38] sm:$0xff]
        %v420 = vld [vmem:[#allocation8 + $0x40] sm:$0xff]
        %v421 = vld [vmem:[#allocation8 + $0x48] sm:$0xff]
        %v422 = vld [vmem:[#allocation8 + $0x50] sm:$0xff]
        %v423 = vld [vmem:[#allocation8 + $0x58] sm:$0xff]
        %v424 = vld [vmem:[#allocation8 + $0x60] sm:$0xff]
        %v425 = vld [vmem:[#allocation8 + $0x68] sm:$0xff]
        %v426 = vld [vmem:[#allocation8 + $0x70] sm:$0xff]
        %v427 = vld [vmem:[#allocation8 + $0x78] sm:$0xff]
        %v444 = vunpack.c.l.b16 %v412
        %v445 = vunpack.c.h.b16 %v412
        %v446 = vunpack.c.l.b16 %v413
        %v447 = vunpack.c.h.b16 %v413
        %v448 = vunpack.c.l.b16 %v414
        %v449 = vunpack.c.h.b16 %v414
        %v450 = vunpack.c.l.b16 %v415
        %v451 = vunpack.c.h.b16 %v415
        %v452 = vunpack.c.l.b16 %v416
        %v453 = vunpack.c.h.b16 %v416
        %v454 = vunpack.c.l.b16 %v417
        %v455 = vunpack.c.h.b16 %v417
        %v456 = vunpack.c.l.b16 %v418
        %v457 = vunpack.c.h.b16 %v418
        %v458 = vunpack.c.l.b16 %v419
        %v459 = vunpack.c.h.b16 %v419
        %v460 = vunpack.c.l.b16 %v420
        %v461 = vunpack.c.h.b16 %v420
        %v462 = vunpack.c.l.b16 %v421
        %v463 = vunpack.c.h.b16 %v421
        %v464 = vunpack.c.l.b16 %v422
        %v465 = vunpack.c.h.b16 %v422
        %v466 = vunpack.c.l.b16 %v423
        %v467 = vunpack.c.h.b16 %v423
        %v468 = vunpack.c.l.b16 %v424
        %v469 = vunpack.c.h.b16 %v424
        %v470 = vunpack.c.l.b16 %v425
        %v471 = vunpack.c.h.b16 %v425
        %v472 = vunpack.c.l.b16 %v426
        %v473 = vunpack.c.h.b16 %v426
        %v474 = vunpack.c.l.b16 %v427
        %v475 = vunpack.c.h.b16 %v427
        %v476 = vpack.c.b16 %v446, %v444
        %v477 = vpack.c.b16 %v447, %v445
        %v478 = vpack.c.b16 %v450, %v448
        %v479 = vpack.c.b16 %v451, %v449
        %v480 = vpack.c.b16 %v454, %v452
        %v481 = vpack.c.b16 %v455, %v453
        %v482 = vpack.c.b16 %v458, %v456
        %v483 = vpack.c.b16 %v459, %v457
        %v484 = vpack.c.b16 %v462, %v460
        %v485 = vpack.c.b16 %v463, %v461
        %v486 = vpack.c.b16 %v466, %v464
        %v487 = vpack.c.b16 %v467, %v465
        %v488 = vpack.c.b16 %v470, %v468
        %v489 = vpack.c.b16 %v471, %v469
        %v490 = vpack.c.b16 %v474, %v472
        %v491 = vpack.c.b16 %v475, %v473
        %508 = vmatprep.subr.bf16.mxu0 %v491
        %509 = vmatpush1.bf16.msra.mxu0 %v490
        %510 = vmatprep.subr.bf16.mxu0 %v489
        %511 = vmatpush1.bf16.msra.mxu0 %v488
        %512 = vmatprep.subr.bf16.mxu0 %v487
        %513 = vmatpush1.bf16.msra.mxu0 %v486
        %514 = vmatprep.subr.bf16.mxu0 %v485
        %515 = vmatpush1.bf16.msra.mxu0 %v484
        %516 = vmatprep.subr.bf16.mxu0 %v483
        %517 = vmatpush1.bf16.msra.mxu0 %v482
        %518 = vmatprep.subr.bf16.mxu0 %v481
        %519 = vmatpush1.bf16.msra.mxu0 %v480
        %520 = vmatprep.subr.bf16.mxu0 %v479
        %521 = vmatpush1.bf16.msra.mxu0 %v478
        %522 = vmatprep.subr.bf16.mxu0 %v477
        %523 = vmatpush1.bf16.msra.mxu0 %v476
        %524 = vmatprep.subr.bf16.mxu0 0
        %525 = vmatpush2.bf16.msra.mxu0 0
        %526 = vmatprep.subr.bf16.mxu0 0
        %527 = vmatpush2.bf16.msra.mxu0 0
        %528 = vmatprep.subr.bf16.mxu0 0
        %529 = vmatpush2.bf16.msra.mxu0 0
        %530 = vmatprep.subr.bf16.mxu0 0
        %531 = vmatpush2.bf16.msra.mxu0 0
        %532 = vmatprep.subr.bf16.mxu0 0
        %533 = vmatpush2.bf16.msra.mxu0 0
        %534 = vmatprep.subr.bf16.mxu0 0
        %535 = vmatpush2.bf16.msra.mxu0 0
        %536 = vmatprep.subr.bf16.mxu0 0
        %537 = vmatpush2.bf16.msra.mxu0 0
        %538 = vmatprep.subr.bf16.mxu0 0
        %539 = vmatpush2.bf16.msra.mxu0 0
        %540 = vmatprep.mubr.bf16.mxu0 0
        %541 = vmatmul.mubr.bf16.gmra.mxu0 %v411
        %v542 = vpop.f32.mrf.mxu0
        %v543 = vadd.f32 0.0, %v542
        %v544 = vpop.f32.mrf.mxu0
        %v545 = vadd.f32 0.0, %v544
        %v546 = vpop.f32.mrf.mxu0
        %v547 = vpop.f32.mrf.mxu0
        %548 = vdwg.mxu0
        %v549 = vld [vmem:[%s347] sm:$0xff]
        %v550 = vpack.c.bf16 %v549, %v549
        %v551 = vld [vmem:[#allocation10] sm:$0xff]
        %v552 = vld [vmem:[#allocation10 + $0x8] sm:$0xff]
        %v553 = vld [vmem:[#allocation10 + $0x10] sm:$0xff]
        %v554 = vld [vmem:[#allocation10 + $0x18] sm:$0xff]
        %v559 = vunpack.c.l.b16 %v551
        %v560 = vunpack.c.h.b16 %v551
        %v561 = vunpack.c.l.b16 %v552
        %v562 = vunpack.c.h.b16 %v552
        %v563 = vunpack.c.l.b16 %v553
        %v564 = vunpack.c.h.b16 %v553
        %v565 = vunpack.c.l.b16 %v554
        %v566 = vunpack.c.h.b16 %v554
        %v567 = vpack.c.b16 %v561, %v559
        %v568 = vpack.c.b16 %v562, %v560
        %v569 = vpack.c.b16 %v565, %v563
        %v570 = vpack.c.b16 %v566, %v564
        %vm575 = vcmask 261120
        %v577 = vsel %vm575, %v550, 0
        %579 = vmatprep.subr.bf16.mxu0 0
        %580 = vmatpush1.bf16.msra.mxu0 0
        %581 = vmatprep.subr.bf16.mxu0 0
        %582 = vmatpush1.bf16.msra.mxu0 0
        %583 = vmatprep.subr.bf16.mxu0 0
        %584 = vmatpush1.bf16.msra.mxu0 0
        %585 = vmatprep.subr.bf16.mxu0 0
        %586 = vmatpush1.bf16.msra.mxu0 0
        %587 = vmatprep.subr.bf16.mxu0 0
        %588 = vmatpush1.bf16.msra.mxu0 0
        %589 = vmatprep.subr.bf16.mxu0 0
        %590 = vmatpush1.bf16.msra.mxu0 0
        %591 = vmatprep.subr.bf16.mxu0 %v570
        %592 = vmatpush1.bf16.msra.mxu0 %v569
        %593 = vmatprep.subr.bf16.mxu0 %v568
        %594 = vmatpush1.bf16.msra.mxu0 %v567
        %595 = vmatprep.subr.bf16.mxu0 0
        %596 = vmatpush2.bf16.msra.mxu0 0
        %597 = vmatprep.subr.bf16.mxu0 0
        %598 = vmatpush2.bf16.msra.mxu0 0
        %599 = vmatprep.subr.bf16.mxu0 0
        %600 = vmatpush2.bf16.msra.mxu0 0
        %601 = vmatprep.subr.bf16.mxu0 0
        %602 = vmatpush2.bf16.msra.mxu0 0
        %603 = vmatprep.subr.bf16.mxu0 0
        %604 = vmatpush2.bf16.msra.mxu0 0
        %605 = vmatprep.subr.bf16.mxu0 0
        %606 = vmatpush2.bf16.msra.mxu0 0
        %607 = vmatprep.subr.bf16.mxu0 0
        %608 = vmatpush2.bf16.msra.mxu0 0
        %609 = vmatprep.subr.bf16.mxu0 0
        %610 = vmatpush2.bf16.msra.mxu0 0
        %611 = vmatprep.mubr.bf16.mxu0 0
        %612 = vmatmul.mubr.bf16.gmra.mxu0 %v577
        %v613 = vpop.f32.mrf.mxu0
        %v614 = vadd.f32 0.0, %v613
        %v615 = vpop.f32.mrf.mxu0
        %v616 = vadd.f32 0.0, %v615
        %v617 = vpop.f32.mrf.mxu0
        %v618 = vpop.f32.mrf.mxu0
        %619 = vdwg.mxu0
        %v620 = vld [vmem:[%s356] sm:$0xff]
        %v621 = vpack.c.bf16 %v620, %v620
        %v622 = vld [vmem:[#allocation11] sm:$0xff]
        %v623 = vld [vmem:[#allocation11 + $0x8] sm:$0xff]
        %v624 = vld [vmem:[#allocation11 + $0x10] sm:$0xff]
        %v625 = vld [vmem:[#allocation11 + $0x18] sm:$0xff]
        %v630 = vunpack.c.l.b16 %v622
        %v631 = vunpack.c.h.b16 %v622
        %v632 = vunpack.c.l.b16 %v623
        %v633 = vunpack.c.h.b16 %v623
        %v634 = vunpack.c.l.b16 %v624
        %v635 = vunpack.c.h.b16 %v624
        %v636 = vunpack.c.l.b16 %v625
        %v637 = vunpack.c.h.b16 %v625
        %v638 = vpack.c.b16 %v632, %v630
        %v639 = vpack.c.b16 %v633, %v631
        %v640 = vpack.c.b16 %v636, %v634
        %v641 = vpack.c.b16 %v637, %v635
        %v647 = vsel %vm575, %v621, 0
        %649 = vmatprep.subr.bf16.mxu0 0
        %650 = vmatpush1.bf16.msra.mxu0 0
        %651 = vmatprep.subr.bf16.mxu0 0
        %652 = vmatpush1.bf16.msra.mxu0 0
        %653 = vmatprep.subr.bf16.mxu0 0
        %654 = vmatpush1.bf16.msra.mxu0 0
        %655 = vmatprep.subr.bf16.mxu0 0
        %656 = vmatpush1.bf16.msra.mxu0 0
        %657 = vmatprep.subr.bf16.mxu0 0
        %658 = vmatpush1.bf16.msra.mxu0 0
        %659 = vmatprep.subr.bf16.mxu0 0
        %660 = vmatpush1.bf16.msra.mxu0 0
        %661 = vmatprep.subr.bf16.mxu0 %v641
        %662 = vmatpush1.bf16.msra.mxu0 %v640
        %663 = vmatprep.subr.bf16.mxu0 %v639
        %664 = vmatpush1.bf16.msra.mxu0 %v638
        %665 = vmatprep.subr.bf16.mxu0 0
        %666 = vmatpush2.bf16.msra.mxu0 0
        %667 = vmatprep.subr.bf16.mxu0 0
        %668 = vmatpush2.bf16.msra.mxu0 0
        %669 = vmatprep.subr.bf16.mxu0 0
        %670 = vmatpush2.bf16.msra.mxu0 0
        %671 = vmatprep.subr.bf16.mxu0 0
        %672 = vmatpush2.bf16.msra.mxu0 0
        %673 = vmatprep.subr.bf16.mxu0 0
        %674 = vmatpush2.bf16.msra.mxu0 0
        %675 = vmatprep.subr.bf16.mxu0 0
        %676 = vmatpush2.bf16.msra.mxu0 0
        %677 = vmatprep.subr.bf16.mxu0 0
        %678 = vmatpush2.bf16.msra.mxu0 0
        %679 = vmatprep.subr.bf16.mxu0 0
        %680 = vmatpush2.bf16.msra.mxu0 0
        %681 = vmatprep.mubr.bf16.mxu0 0
        %682 = vmatmul.mubr.bf16.gmra.mxu0 %v647
        %v683 = vpop.f32.mrf.mxu0
        %v684 = vadd.f32 0.0, %v683
        %v685 = vpop.f32.mrf.mxu0
        %v686 = vadd.f32 0.0, %v685
        %v687 = vpop.f32.mrf.mxu0
        %v688 = vpop.f32.mrf.mxu0
        %689 = vdwg.mxu0
        %v690 = vld [vmem:[%s6] sm:$0x1]
        %v691 = vld [vmem:[%s6 + $0x1] sm:$0x1]
        %v692 = vld [vmem:[%s6 + $0x2] sm:$0x1]
        %v693 = vld [vmem:[%s6 + $0x3] sm:$0x1]
        %v694 = vld [vmem:[%s6 + $0x4] sm:$0x1]
        %v695 = vld [vmem:[%s6 + $0x5] sm:$0x1]
        %v696 = vadd.f32 %v543, %v614
        %v697 = vlaneseq
        %v698 = vshrl.u32 %v697, 7
        %v699 = vsub.s32 0, %v698
        %v700 = vrot.slane %v690, %v699
        %v701 = vadd.f32 %v696, %v700
        %v702 = vmax.f32 %v701, 0.0
        %v703 = vadd.f32 %v545, %v684
        %v704 = vlaneseq
        %v705 = vshrl.u32 %v704, 7
        %v706 = vsub.s32 0, %v705
        %v707 = vrot.slane %v691, %v706
        %v708 = vadd.f32 %v703, %v707
        %v709 = vmax.f32 %v708, 0.0
        %v710 = vlaneseq
        %v711 = vshrl.u32 %v710, 7
        %v712 = vsub.s32 0, %v711
        %v713 = vrot.slane %v692, %v712
        %v714 = vadd.f32 %v616, %v713
        %v715 = vlaneseq
        %v716 = vshrl.u32 %v715, 7
        %v717 = vsub.s32 0, %v716
        %v718 = vrot.slane %v693, %v717
        %v719 = vadd.f32 %v686, %v718
        %v720 = vmul.f32 %v702, %v714
        %v721 = vmul.f32 %v709, %v719
        %v722 = vadd.f32 %v720, %v721
        %v723 = vmul.f32 %v410, %v410
        %724 = vadd.xlane.f32.xlu0 %v723
        %v725 = vpop.xlane.xlu0 %724
        %v726 = vrsqrt.pop %v725
        %v727 = vmul.f32 %v725, %v726
        %vm728 = vcmp.eq.f32.partialorder %v725, inf
        %v729 = vsel %vm728, %v725, %v727
        %vm730 = vcmp.eq.f32.partialorder %v725, 0.0
        %v731 = vand.u32 %v725, 2147483648
        %v732 = vsel %vm730, %v731, %v729
        %v733 = vmul.f32 %v722, %v722
        %734 = vadd.xlane.f32.xlu0 %v733
        %v735 = vpop.xlane.xlu0 %734
        %v736 = vrsqrt.pop %v735
        %v737 = vmul.f32 %v735, %v736
        %vm738 = vcmp.eq.f32.partialorder %v735, inf
        %v739 = vsel %vm738, %v735, %v737
        %vm740 = vcmp.eq.f32.partialorder %v735, 0.0
        %v741 = vand.u32 %v735, 2147483648
        %v742 = vsel %vm740, %v741, %v739
        %vm743 = vcmp.eq.f32.partialorder %v742, 0.0
        %v744 = vsel %vm743, 1.0, %v742
        %v745 = vadd.f32 %v744, 1e-06
        %v746 = vrcp.pop %v745
        %v747 = vmul.f32 %v732, %v746
        %v748 = vmin.f32 %v747, 1.0
        %v749 = vmul.f32 %v748, %v722
        %v750 = vadd.f32 %v749, %v410
        %751 = vadd.xlane.f32.xlu0 %v750
        %v752 = vpop.xlane.xlu0 %751
        %v753 = vrcp.pop 128.0
        %v754 = vmul.f32 %v752, %v753
        %v755 = vsub.f32 %v750, %v754
        %v756 = vmul.f32 %v755, %v755
        %757 = vadd.xlane.f32.xlu0 %v756
        %v758 = vpop.xlane.xlu0 %757
        %v759 = vmul.f32 %v758, %v753
        %v760 = vadd.f32 %v759, 1e-05
        %v761 = vrsqrt.pop %v760
        %v762 = vmul.f32 %v755, %v761
        %v763 = vlaneseq
        %v764 = vshrl.u32 %v763, 7
        %v765 = vsub.s32 0, %v764
        %v766 = vrot.slane %v694, %v765
        %v767 = vmul.f32 %v762, %v766
        %v768 = vlaneseq
        %v769 = vshrl.u32 %v768, 7
        %v770 = vsub.s32 0, %v769
        %v771 = vrot.slane %v695, %v770
        %v772 = vadd.f32 %v767, %v771
        %773 = vst [vmem:[%s408] sm:$0xff] %v772
        %s774 = sand.u32 %s199, 1
        %s775 = scalar_lea.sflag [#allocation4], %s774
        %s776 = sand.u32 %s199, 1
        %s777 = smul.addr %s776, 8
        %s778 = scalar_lea.vmem [#allocation13], %s777
        // Predicated region
        $region73: #{tpu_custom_call.1} parent=47 // pred_check
          %p779 = pneg %p209
        $region74: #{tpu_custom_call.1} parent=47 // pred_check_branch
          %781 = sbr.rel (%p779) target = $region76
        $region75: #{tpu_custom_call.1} parent=47 // pred_region
          %s783 = ssub.s32 128, 128
          %784 = vsyncadd %s775, %s783
          %s785 = smul.addr %s29, 128
          %s786 = scalar_lea.hbm %s7, %s785
          %s788 = sshll.u32 %s778, 4
          %s789 = int_to_ptr.vmem [resolvable:$true] %s788
          %791 = dma.vmem_to_hbm [thread:$0]  %s789, 128, %s786, %s775
        $region76: #{tpu_custom_call.1} parent=47 // pred_fallthru
          _
      $region48: #{tpu_custom_call.1} parent=5 // pred_fallthru
        _
      %p792 = scmp.le.s32.totalorder 2, %s24
      // Predicated region
      $region77: #{tpu_custom_call.1} parent=5 // pred_check
        %p793 = pneg %p792
      $region78: #{tpu_custom_call.1} parent=5 // pred_check_branch
        %795 = sbr.rel (%p793) target = $region80
      $region79: #{tpu_custom_call.1} parent=5 // pred_region
        %s796 = ssub.s32 %s24, 2
        // Predicated region
        $region81: #{tpu_custom_call.1} parent=79 // pred_check
          %p797 = pneg %p215
        $region82: #{tpu_custom_call.1} parent=79 // pred_check_branch
          %799 = sbr.rel (%p797) target = $region84
        $region83: #{tpu_custom_call.1} parent=79 // pred_region
          %s800 = sand.u32 %s200, 1
          %s801 = scalar_lea.sflag [#allocation4], %s800
          %s802 = sand.u32 %s200, 1
          %s803 = smul.addr %s802, 8
          %s804 = scalar_lea.vmem [#allocation13], %s803
          %805 = dma.done %s801, 128
        $region84: #{tpu_custom_call.1} parent=79 // pred_fallthru
          _
      $region80: #{tpu_custom_call.1} parent=5 // pred_fallthru
        _
    $region6: #{tpu_custom_call.1} parent=1 // loop_footer
      %s28 = sadd.s32 1, %s24
    $region7: #{tpu_custom_call.1} parent=1 // loop_footer_branch
      %23 = sbr.rel target = $region3
    $region8: #{tpu_custom_call.1} parent=1 // loop_exit
      _
    %806 = vsyncpa [#allocation3], 1
    %s807 = scalar_lea.sflag [#allocation3], 1
    %808 = vsyncpa %s807, 1
    %809 = vsyncpa [#allocation6], 1
    %s810 = scalar_lea.sflag [#allocation6], 1
    %811 = vsyncpa %s810, 1
    %812 = vsyncpa [#allocation9], 1
    %813 = vsyncpa [#allocation12], 1
    %814 = vsyncpa [#allocation4], 1
    %s815 = scalar_lea.sflag [#allocation4], 1
    %816 = vsyncpa %s815, 1

// kernel: tpu_custom_call.1
$region0: #{tpu_custom_call.1}
  #allocation0 [shape = 'u32[]', space=smem, size = 0x4, offset = 0x4, fixed_abs, tag = 'smem constant byte address 0x4 - core index']
  #allocation1 [shape = 'u32[144,128]{1,0:T(1,128)}', space=vmem, size = 0x12000, scoped, tag = 'internal scratch']
  %s0 = inlined_call_operand.hbm [shape: f32[16,128], index: 0, kind: input, shape index: {}]
  %s1 = inlined_call_operand.hbm [shape: f32[16,32], index: 1, kind: input, shape index: {}]
  %s2 = inlined_call_operand.hbm [shape: f32[16,32], index: 2, kind: input, shape index: {}]
  %s3 = inlined_call_operand.hbm [shape: bf16[128,256], index: 3, kind: input, shape index: {}]
  %s4 = inlined_call_operand.hbm [shape: bf16[32,256], index: 4, kind: input, shape index: {}]
  %s5 = inlined_call_operand.hbm [shape: bf16[32,256], index: 5, kind: input, shape index: {}]
  %s6 = inlined_call_operand.vmem [shape: f32[6,128], index: 6, kind: input, shape index: {}]
  %s7 = inlined_call_operand.hbm [shape: f32[16,128], index: 7, kind: output, shape index: {}]
  %s8 = sld [smem:[#allocation0]]
  $region85: #{tpu_custom_call.1} parent=0
    _
  %s10 = ssub.s32 1, %s8
  %s11 = scalar_select 0, %s10, %s8
  $region1: #{tpu_custom_call.1} parent=0
    #allocation2 [shape = 'u8[8192]{0}', space=vmem, size = 0x2000, scoped, tag = 'input window, operand 0']
    #allocation3 [shape = 's32[2]{0}', space=sflag, size = 0x8, scoped, tag = 'scoped memory for tpu_custom_call.1']
    #allocation4 [shape = 's32[2]{0}', space=sflag, size = 0x8, scoped, tag = 'scoped memory for tpu_custom_call.1']
    #allocation5 [shape = 'u8[8192]{0}', space=vmem, size = 0x2000, scoped, tag = 'input window, operand 1']
    #allocation6 [shape = 's32[2]{0}', space=sflag, size = 0x8, scoped, tag = 'scoped memory for tpu_custom_call.1']
    #allocation7 [shape = 'u8[8192]{0}', space=vmem, size = 0x2000, scoped, tag = 'input window, operand 2']
    #allocation8 [shape = 'u8[65536]{0}', space=vmem, size = 0x10000, scoped, tag = 'input window, operand 3, single buffered']
    #allocation9 [shape = 's32[1]{0}', space=sflag, size = 0x4, scoped, tag = 'scoped memory for tpu_custom_call.1']
    #allocation10 [shape = 'u8[16384]{0}', space=vmem, size = 0x4000, scoped, tag = 'input window, operand 4, single buffered']
    #allocation11 [shape = 'u8[16384]{0}', space=vmem, size = 0x4000, scoped, tag = 'input window, operand 5, single buffered']
    #allocation12 [shape = 's32[1]{0}', space=sflag, size = 0x4, scoped, tag = 'scoped memory for tpu_custom_call.1']
    #allocation13 [shape = 'u8[8192]{0}', space=vmem, size = 0x2000, scoped, tag = 'output window, operand 0']
    %12 = vsyncpa [#allocation3], 0
    %s13 = scalar_lea.sflag [#allocation3], 1
    %14 = vsyncpa %s13, 0
    %15 = vsyncpa [#allocation6], 0
    %s16 = scalar_lea.sflag [#allocation6], 1
    %17 = vsyncpa %s16, 0
    %18 = vsyncpa [#allocation9], 0
    %19 = vsyncpa [#allocation12], 0
    %20 = vsyncpa [#allocation4], 0
    %s21 = scalar_lea.sflag [#allocation4], 1
    %22 = vsyncpa %s21, 0
    loop: start=0, step=1, limit=4
    $region2: #{tpu_custom_call.1} parent=1 // loop_pre_header
      _
    $region3: #{tpu_custom_call.1} parent=1 // loop_header
      %s24 = sphi 0, %s28
      %p25 = scmp.ge.s32.totalorder %s24, 4
      %s34 = sphi 0, %s36
      %s37 = sphi 0, %s34
      %s38 = sphi 0, %s37
      %s54 = sphi 0, %s38
      %s60 = sphi 0, %s62
      %s63 = sphi 0, %s60
      %s64 = sphi 0, %s63
      %s80 = sphi 0, %s64
      %s86 = sphi 0, %s88
      %s89 = sphi 0, %s86
      %s90 = sphi 0, %s89
      %s106 = sphi 0, %s90
      %s110 = sphi 0, %s110
      %s112 = sphi 0, %s110
      %s113 = sphi 0, %s112
      %s127 = sphi 0, %s113
      %s131 = sphi 0, %s131
      %s133 = sphi 0, %s131
      %s134 = sphi 0, %s133
      %s148 = sphi 0, %s134
      %s152 = sphi 0, %s152
      %s154 = sphi 0, %s152
      %s155 = sphi 0, %s154
      %s169 = sphi 0, %s155
      %s173 = sphi 0, %s173
      %s175 = sphi 0, %s173
      %s176 = sphi 0, %s175
      %s190 = sphi 0, %s176
      %s196 = sphi 0, %s198
      %s199 = sphi 0, %s196
      %s200 = sphi 0, %s199
      %s216 = sphi 0, %s200
    $region4: #{tpu_custom_call.1} parent=1 // loop_header_branch
      %27 = sbr.rel (%p25) target = $region8
    $region5: #{tpu_custom_call.1} parent=1 // loop_body
      %s29 = ssub.s32 %s24, 1
      %s30 = ssub.s32 %s24, 2
      %s31 = sadd.s32 %s24, 1
      %s32 = ssub.s32 %s24, %s31
      %p33 = scmp.eq.s32.totalorder %s32, 0
      %s35 = sadd.s32 %s34, 1
      %s36 = scalar_select %p33, %s34, %s35
      %p39 = pneg %p33
      %p40 = scmp.eq.s32.totalorder %s24, 1
      %p41 = por %p39, %p40
      %p42 = scmp.ne.s32.totalorder %s34, %s37
      %p43 = scmp.eq.s32.totalorder %s24, 0
      %p44 = por %p42, %p43
      %p45 = scmp.ne.s32.totalorder %s34, %s37
      %p46 = scmp.eq.s32.totalorder %s29, 1
      %p47 = por %p45, %p46
      %p48 = scmp.ne.s32.totalorder %s37, %s38
      %p49 = scmp.eq.s32.totalorder %s29, 0
      %p50 = por %p48, %p49
      %p51 = scmp.ne.s32.totalorder %s37, %s38
      %p52 = scmp.eq.s32.totalorder %s30, 1
      %p53 = por %p51, %p52
      %p55 = scmp.ne.s32.totalorder %s38, %s54
      %p56 = scmp.eq.s32.totalorder %s30, 0
      %p57 = por %p55, %p56
      %s58 = ssub.s32 %s24, %s31
      %p59 = scmp.eq.s32.totalorder %s58, 0
      %s61 = sadd.s32 %s60, 1
      %s62 = scalar_select %p59, %s60, %s61
      %p65 = pneg %p59
      %p66 = scmp.eq.s32.totalorder %s24, 1
      %p67 = por %p65, %p66
      %p68 = scmp.ne.s32.totalorder %s60, %s63
      %p69 = scmp.eq.s32.totalorder %s24, 0
      %p70 = por %p68, %p69
      %p71 = scmp.ne.s32.totalorder %s60, %s63
      %p72 = scmp.eq.s32.totalorder %s29, 1
      %p73 = por %p71, %p72
      %p74 = scmp.ne.s32.totalorder %s63, %s64
      %p75 = scmp.eq.s32.totalorder %s29, 0
      %p76 = por %p74, %p75
      %p77 = scmp.ne.s32.totalorder %s63, %s64
      %p78 = scmp.eq.s32.totalorder %s30, 1
      %p79 = por %p77, %p78
      %p81 = scmp.ne.s32.totalorder %s64, %s80
      %p82 = scmp.eq.s32.totalorder %s30, 0
      %p83 = por %p81, %p82
      %s84 = ssub.s32 %s24, %s31
      %p85 = scmp.eq.s32.totalorder %s84, 0
      %s87 = sadd.s32 %s86, 1
      %s88 = scalar_select %p85, %s86, %s87
      %p91 = pneg %p85
      %p92 = scmp.eq.s32.totalorder %s24, 1
      %p93 = por %p91, %p92
      %p94 = scmp.ne.s32.totalorder %s86, %s89
      %p95 = scmp.eq.s32.totalorder %s24, 0
      %p96 = por %p94, %p95
      %p97 = scmp.ne.s32.totalorder %s86, %s89
      %p98 = scmp.eq.s32.totalorder %s29, 1
      %p99 = por %p97, %p98
      %p100 = scmp.ne.s32.totalorder %s89, %s90
      %p101 = scmp.eq.s32.totalorder %s29, 0
      %p102 = por %p100, %p101
      %p103 = scmp.ne.s32.totalorder %s89, %s90
      %p104 = scmp.eq.s32.totalorder %s30, 1
      %p105 = por %p103, %p104
      %p107 = scmp.ne.s32.totalorder %s90, %s106
      %p108 = scmp.eq.s32.totalorder %s30, 0
      %p109 = por %p107, %p108
      %s111 = sadd.s32 %s110, 1
      %p114 = scmp.eq.s32.totalorder %s24, 1
      %p115 = scmp.ne.s32.totalorder %s110, %s112
      %p116 = scmp.eq.s32.totalorder %s24, 0
      %p117 = por %p115, %p116
      %p118 = scmp.ne.s32.totalorder %s110, %s112
      %p119 = scmp.eq.s32.totalorder %s29, 1
      %p120 = por %p118, %p119
      %p121 = scmp.ne.s32.totalorder %s112, %s113
      %p122 = scmp.eq.s32.totalorder %s29, 0
      %p123 = por %p121, %p122
      %p124 = scmp.ne.s32.totalorder %s112, %s113
      %p125 = scmp.eq.s32.totalorder %s30, 1
      %p126 = por %p124, %p125
      %p128 = scmp.ne.s32.totalorder %s113, %s127
      %p129 = scmp.eq.s32.totalorder %s30, 0
      %p130 = por %p128, %p129
      %s132 = sadd.s32 %s131, 1
      %p135 = scmp.eq.s32.totalorder %s24, 1
      %p136 = scmp.ne.s32.totalorder %s131, %s133
      %p137 = scmp.eq.s32.totalorder %s24, 0
      %p138 = por %p136, %p137
      %p139 = scmp.ne.s32.totalorder %s131, %s133
      %p140 = scmp.eq.s32.totalorder %s29, 1
      %p141 = por %p139, %p140
      %p142 = scmp.ne.s32.totalorder %s133, %s134
      %p143 = scmp.eq.s32.totalorder %s29, 0
      %p144 = por %p142, %p143
      %p145 = scmp.ne.s32.totalorder %s133, %s134
      %p146 = scmp.eq.s32.totalorder %s30, 1
      %p147 = por %p145, %p146
      %p149 = scmp.ne.s32.totalorder %s134, %s148
      %p150 = scmp.eq.s32.totalorder %s30, 0
      %p151 = por %p149, %p150
      %s153 = sadd.s32 %s152, 1
      %p156 = scmp.eq.s32.totalorder %s24, 1
      %p157 = scmp.ne.s32.totalorder %s152, %s154
      %p158 = scmp.eq.s32.totalorder %s24, 0
      %p159 = por %p157, %p158
      %p160 = scmp.ne.s32.totalorder %s152, %s154
      %p161 = scmp.eq.s32.totalorder %s29, 1
      %p162 = por %p160, %p161
      %p163 = scmp.ne.s32.totalorder %s154, %s155
      %p164 = scmp.eq.s32.totalorder %s29, 0
      %p165 = por %p163, %p164
      %p166 = scmp.ne.s32.totalorder %s154, %s155
      %p167 = scmp.eq.s32.totalorder %s30, 1
      %p168 = por %p166, %p167
      %p170 = scmp.ne.s32.totalorder %s155, %s169
      %p171 = scmp.eq.s32.totalorder %s30, 0
      %p172 = por %p170, %p171
      %s174 = sadd.s32 %s173, 1
      %p177 = scmp.eq.s32.totalorder %s24, 1
      %p178 = scmp.ne.s32.totalorder %s173, %s175
      %p179 = scmp.eq.s32.totalorder %s24, 0
      %p180 = por %p178, %p179
      %p181 = scmp.ne.s32.totalorder %s173, %s175
      %p182 = scmp.eq.s32.totalorder %s29, 1
      %p183 = por %p181, %p182
      %p184 = scmp.ne.s32.totalorder %s175, %s176
      %p185 = scmp.eq.s32.totalorder %s29, 0
      %p186 = por %p184, %p185
      %p187 = scmp.ne.s32.totalorder %s175, %s176
      %p188 = scmp.eq.s32.totalorder %s30, 1
      %p189 = por %p187, %p188
      %p191 = scmp.ne.s32.totalorder %s176, %s190
      %p192 = scmp.eq.s32.totalorder %s30, 0
      %p193 = por %p191, %p192
      %s194 = ssub.s32 %s24, %s31
      %p195 = scmp.eq.s32.totalorder %s194, 0
      %s197 = sadd.s32 %s196, 1
      %s198 = scalar_select %p195, %s196, %s197
      %p201 = pneg %p195
      %p202 = scmp.eq.s32.totalorder %s24, 1
      %p203 = por %p201, %p202
      %p204 = scmp.ne.s32.totalorder %s196, %s199
      %p205 = scmp.eq.s32.totalorder %s24, 0
      %p206 = por %p204, %p205
      %p207 = scmp.ne.s32.totalorder %s196, %s199
      %p208 = scmp.eq.s32.totalorder %s29, 1
      %p209 = por %p207, %p208
      %p210 = scmp.ne.s32.totalorder %s199, %s200
      %p211 = scmp.eq.s32.totalorder %s29, 0
      %p212 = por %p210, %p211
      %p213 = scmp.ne.s32.totalorder %s199, %s200
      %p214 = scmp.eq.s32.totalorder %s30, 1
      %p215 = por %p213, %p214
      %p217 = scmp.ne.s32.totalorder %s200, %s216
      %p218 = scmp.eq.s32.totalorder %s30, 0
      %p219 = por %p217, %p218
      %p220 = scmp.le.s32.totalorder 1, %s24
      %p221 = scmp.lt.s32.totalorder %s24, 3
      %p222 = pnand %p220, %p221
      %p223 = pneg %p222
      // Predicated region
      $region9: #{tpu_custom_call.1} parent=5 // pred_check
        _
      $region10: #{tpu_custom_call.1} parent=5 // pred_check_branch
        %225 = sbr.rel (%p222) target = $region12
      $region11: #{tpu_custom_call.1} parent=5 // pred_region
        %s226 = ssub.s32 %s24, 1
        // Predicated region
        $region13: #{tpu_custom_call.1} parent=11 // pred_check
          %p227 = pneg %p123
        $region14: #{tpu_custom_call.1} parent=11 // pred_check_branch
          %229 = sbr.rel (%p227) target = $region16
        $region15: #{tpu_custom_call.1} parent=11 // pred_region
          %s231 = ssub.s32 2048, 2048
          %232 = vsyncadd [#allocation9], %s231
          %s233 = sshll.u32 [#allocation8], 4
          %s234 = int_to_ptr.vmem [resolvable:$true] %s233
          %239 = dma.hbm_to_vmem [thread:$0]  %s3, 2048, %s234, [#allocation9], 128, 128, 8
        $region16: #{tpu_custom_call.1} parent=11 // pred_fallthru
          _
        // Predicated region
        $region17: #{tpu_custom_call.1} parent=11 // pred_check
          %p240 = pneg %p144
        $region18: #{tpu_custom_call.1} parent=11 // pred_check_branch
          %242 = sbr.rel (%p240) target = $region20
        $region19: #{tpu_custom_call.1} parent=11 // pred_region
          %s244 = ssub.s32 512, 512
          %245 = vsyncadd [#allocation9], %s244
          %s246 = sshll.u32 [#allocation10], 4
          %s247 = int_to_ptr.vmem [resolvable:$true] %s246
          %252 = dma.hbm_to_vmem [thread:$0]  %s4, 512, %s247, [#allocation9], 128, 128, 8
        $region20: #{tpu_custom_call.1} parent=11 // pred_fallthru
          _
        // Predicated region
        $region21: #{tpu_custom_call.1} parent=11 // pred_check
          %p253 = pneg %p165
        $region22: #{tpu_custom_call.1} parent=11 // pred_check_branch
          %255 = sbr.rel (%p253) target = $region24
        $region23: #{tpu_custom_call.1} parent=11 // pred_region
          %s257 = ssub.s32 512, 512
          %258 = vsyncadd [#allocation12], %s257
          %s259 = sshll.u32 [#allocation11], 4
          %s260 = int_to_ptr.vmem [resolvable:$true] %s259
          %265 = dma.hbm_to_vmem [thread:$0]  %s5, 512, %s260, [#allocation12], 128, 128, 8
        $region24: #{tpu_custom_call.1} parent=11 // pred_fallthru
          _
        // Predicated region
        $region25: #{tpu_custom_call.1} parent=11 // pred_check
          %p266 = pneg %p186
        $region26: #{tpu_custom_call.1} parent=11 // pred_check_branch
          %268 = sbr.rel (%p266) target = $region28
        $region27: #{tpu_custom_call.1} parent=11 // pred_region
          _
        $region28: #{tpu_custom_call.1} parent=11 // pred_fallthru
          _
      $region12: #{tpu_custom_call.1} parent=5 // pred_fallthru
        _
      %p269 = scmp.lt.s32.totalorder %s24, 2
      // Predicated region
      $region29: #{tpu_custom_call.1} parent=5 // pred_check
        %p270 = pneg %p269
      $region30: #{tpu_custom_call.1} parent=5 // pred_check_branch
        %272 = sbr.rel (%p270) target = $region32
      $region31: #{tpu_custom_call.1} parent=5 // pred_region
        // Predicated region
        $region33: #{tpu_custom_call.1} parent=31 // pred_check
          %p273 = pneg %p44
        $region34: #{tpu_custom_call.1} parent=31 // pred_check_branch
          %275 = sbr.rel (%p273) target = $region36
        $region35: #{tpu_custom_call.1} parent=31 // pred_region
          %s276 = sand.u32 %s34, 1
          %s277 = scalar_lea.sflag [#allocation3], %s276
          %s278 = sand.u32 %s34, 1
          %s279 = smul.addr %s278, 8
          %s280 = scalar_lea.vmem [#allocation2], %s279
          %s282 = ssub.s32 128, 128
          %283 = vsyncadd %s277, %s282
          %s284 = smul.addr %s24, 128
          %s285 = scalar_lea.hbm %s0, %s284
          %s287 = sshll.u32 %s280, 4
          %s288 = int_to_ptr.vmem [resolvable:$true] %s287
          %290 = dma.hbm_to_vmem [thread:$0]  %s285, 128, %s288, %s277
        $region36: #{tpu_custom_call.1} parent=31 // pred_fallthru
          _
        // Predicated region
        $region37: #{tpu_custom_call.1} parent=31 // pred_check
          %p291 = pneg %p70
        $region38: #{tpu_custom_call.1} parent=31 // pred_check_branch
          %293 = sbr.rel (%p291) target = $region40
        $region39: #{tpu_custom_call.1} parent=31 // pred_region
          %s294 = sand.u32 %s24, 1
          %s295 = scalar_lea.sflag [#allocation6], %s294
          %s296 = sand.u32 %s60, 1
          %s297 = smul.addr %s296, 8
          %s298 = scalar_lea.vmem [#allocation5], %s297
          %s300 = ssub.s32 128, 128
          %301 = vsyncadd %s295, %s300
          %s302 = smul.addr %s24, 128
          %s303 = scalar_lea.hbm %s1, %s302
          %s305 = sshll.u32 %s298, 4
          %s306 = int_to_ptr.vmem [resolvable:$true] %s305
          %308 = dma.hbm_to_vmem [thread:$0]  %s303, 128, %s306, %s295
        $region40: #{tpu_custom_call.1} parent=31 // pred_fallthru
          _
        // Predicated region
        $region41: #{tpu_custom_call.1} parent=31 // pred_check
          %p309 = pneg %p96
        $region42: #{tpu_custom_call.1} parent=31 // pred_check_branch
          %311 = sbr.rel (%p309) target = $region44
        $region43: #{tpu_custom_call.1} parent=31 // pred_region
          %s312 = sand.u32 %s24, 1
          %s313 = scalar_lea.sflag [#allocation6], %s312
          %s314 = sand.u32 %s86, 1
          %s315 = smul.addr %s314, 8
          %s316 = scalar_lea.vmem [#allocation7], %s315
          %s318 = ssub.s32 128, 128
          %319 = vsyncadd %s313, %s318
          %s320 = smul.addr %s24, 128
          %s321 = scalar_lea.hbm %s2, %s320
          %s323 = sshll.u32 %s316, 4
          %s324 = int_to_ptr.vmem [resolvable:$true] %s323
          %326 = dma.hbm_to_vmem [thread:$0]  %s321, 128, %s324, %s313
        $region44: #{tpu_custom_call.1} parent=31 // pred_fallthru
          _
      $region32: #{tpu_custom_call.1} parent=5 // pred_fallthru
        _
      %p327 = scmp.le.s32.totalorder 1, %s24
      %p328 = scmp.lt.s32.totalorder %s24, 3
      %p329 = pnand %p327, %p328
      %p330 = pneg %p329
      // Predicated region
      $region45: #{tpu_custom_call.1} parent=5 // pred_check
        _
      $region46: #{tpu_custom_call.1} parent=5 // pred_check_branch
        %332 = sbr.rel (%p329) target = $region48
      $region47: #{tpu_custom_call.1} parent=5 // pred_region
        %s333 = ssub.s32 %s24, 1
        %s334 = sand.u32 %s37, 1
        %s335 = scalar_lea.sflag [#allocation3], %s334
        %s336 = sand.u32 %s37, 1
        %s337 = smul.addr %s336, 8
        %s338 = scalar_lea.vmem [#allocation2], %s337
        // Predicated region
        $region49: #{tpu_custom_call.1} parent=47 // pred_check
          %p339 = pneg %p50
        $region50: #{tpu_custom_call.1} parent=47 // pred_check_branch
          %341 = sbr.rel (%p339) target = $region52
        $region51: #{tpu_custom_call.1} parent=47 // pred_region
          %342 = dma.done %s335, 128
        $region52: #{tpu_custom_call.1} parent=47 // pred_fallthru
          _
        %s343 = sand.u32 %s29, 1
        %s344 = scalar_lea.sflag [#allocation6], %s343
        %s345 = sand.u32 %s63, 1
        %s346 = smul.addr %s345, 8
        %s347 = scalar_lea.vmem [#allocation5], %s346
        // Predicated region
        $region53: #{tpu_custom_call.1} parent=47 // pred_check
          %p348 = pneg %p76
        $region54: #{tpu_custom_call.1} parent=47 // pred_check_branch
          %350 = sbr.rel (%p348) target = $region56
        $region55: #{tpu_custom_call.1} parent=47 // pred_region
          %351 = dma.done %s344, 128
        $region56: #{tpu_custom_call.1} parent=47 // pred_fallthru
          _
        %s352 = sand.u32 %s29, 1
        %s353 = scalar_lea.sflag [#allocation6], %s352
        %s354 = sand.u32 %s89, 1
        %s355 = smul.addr %s354, 8
        %s356 = scalar_lea.vmem [#allocation7], %s355
        // Predicated region
        $region57: #{tpu_custom_call.1} parent=47 // pred_check
          %p357 = pneg %p102
        $region58: #{tpu_custom_call.1} parent=47 // pred_check_branch
          %359 = sbr.rel (%p357) target = $region60
        $region59: #{tpu_custom_call.1} parent=47 // pred_region
          %360 = dma.done %s353, 128
        $region60: #{tpu_custom_call.1} parent=47 // pred_fallthru
          _
        // Predicated region
        $region61: #{tpu_custom_call.1} parent=47 // pred_check
          %p361 = pneg %p123
        $region62: #{tpu_custom_call.1} parent=47 // pred_check_branch
          %363 = sbr.rel (%p361) target = $region64
        $region63: #{tpu_custom_call.1} parent=47 // pred_region
          %364 = dma.done [#allocation9], 2048
        $region64: #{tpu_custom_call.1} parent=47 // pred_fallthru
          _
        // Predicated region
        $region65: #{tpu_custom_call.1} parent=47 // pred_check
          %p365 = pneg %p144
        $region66: #{tpu_custom_call.1} parent=47 // pred_check_branch
          %367 = sbr.rel (%p365) target = $region68
        $region67: #{tpu_custom_call.1} parent=47 // pred_region
          %368 = dma.done [#allocation9], 512
        $region68: #{tpu_custom_call.1} parent=47 // pred_fallthru
          _
        // Predicated region
        $region69: #{tpu_custom_call.1} parent=47 // pred_check
          %p369 = pneg %p165
        $region70: #{tpu_custom_call.1} parent=47 // pred_check_branch
          %371 = sbr.rel (%p369) target = $region72
        $region71: #{tpu_custom_call.1} parent=47 // pred_region
          %372 = dma.done [#allocation12], 512
        $region72: #{tpu_custom_call.1} parent=47 // pred_fallthru
          _
        %s373 = sand.u32 %s37, 1
        %s374 = scalar_lea.sflag [#allocation3], %s373
        %s375 = sand.u32 %s37, 1
        %s376 = smul.addr %s375, 8
        %s377 = scalar_lea.vmem [#allocation2], %s376
        %p378 = pneg %p50
        %p379 = pneg %p47
        %s380 = sand.u32 %s29, 1
        %s381 = scalar_lea.sflag [#allocation6], %s380
        %s382 = sand.u32 %s63, 1
        %s383 = smul.addr %s382, 8
        %s384 = scalar_lea.vmem [#allocation5], %s383
        %p385 = pneg %p76
        %p386 = pneg %p73
        %s387 = sand.u32 %s29, 1
        %s388 = scalar_lea.sflag [#allocation6], %s387
        %s389 = sand.u32 %s89, 1
        %s390 = smul.addr %s389, 8
        %s391 = scalar_lea.vmem [#allocation7], %s390
        %p392 = pneg %p102
        %p393 = pneg %p99
        %p394 = pneg %p123
        %p395 = pneg %p120
        %p396 = pneg %p144
        %p397 = pneg %p141
        %p398 = pneg %p165
        %p399 = pneg %p162
        %p400 = pneg %p186
        %p401 = pneg %p183
        %p402 = pneg %p212
        %p403 = pneg %p209
        %s404 = sand.u32 %s199, 1
        %s405 = scalar_lea.sflag [#allocation4], %s404
        %s406 = sand.u32 %s199, 1
        %s407 = smul.addr %s406, 8
        %s408 = scalar_lea.vmem [#allocation13], %s407
        %v410 = vld [vmem:[%s338] sm:$0xff]
        %v411 = vpack.c.bf16 %v410, %v410
        %v412 = vld [vmem:[#allocation8] sm:$0xff]
        %v413 = vld [vmem:[#allocation8 + $0x8] sm:$0xff]
        %v414 = vld [vmem:[#allocation8 + $0x10] sm:$0xff]
        %v415 = vld [vmem:[#allocation8 + $0x18] sm:$0xff]
        %v416 = vld [vmem:[#allocation8 + $0x20] sm:$0xff]
        %v417 = vld [vmem:[#allocation8 + $0x28] sm:$0xff]
        %v418 = vld [vmem:[#allocation8 + $0x30] sm:$0xff]
        %v419 = vld [vmem:[#allocation8 + $0x38] sm:$0xff]
        %v420 = vld [vmem:[#allocation8 + $0x40] sm:$0xff]
        %v421 = vld [vmem:[#allocation8 + $0x48] sm:$0xff]
        %v422 = vld [vmem:[#allocation8 + $0x50] sm:$0xff]
        %v423 = vld [vmem:[#allocation8 + $0x58] sm:$0xff]
        %v424 = vld [vmem:[#allocation8 + $0x60] sm:$0xff]
        %v425 = vld [vmem:[#allocation8 + $0x68] sm:$0xff]
        %v426 = vld [vmem:[#allocation8 + $0x70] sm:$0xff]
        %v427 = vld [vmem:[#allocation8 + $0x78] sm:$0xff]
        %v444 = vunpack.c.l.b16 %v412
        %v445 = vunpack.c.h.b16 %v412
        %v446 = vunpack.c.l.b16 %v413
        %v447 = vunpack.c.h.b16 %v413
        %v448 = vunpack.c.l.b16 %v414
        %v449 = vunpack.c.h.b16 %v414
        %v450 = vunpack.c.l.b16 %v415
        %v451 = vunpack.c.h.b16 %v415
        %v452 = vunpack.c.l.b16 %v416
        %v453 = vunpack.c.h.b16 %v416
        %v454 = vunpack.c.l.b16 %v417
        %v455 = vunpack.c.h.b16 %v417
        %v456 = vunpack.c.l.b16 %v418
        %v457 = vunpack.c.h.b16 %v418
        %v458 = vunpack.c.l.b16 %v419
        %v459 = vunpack.c.h.b16 %v419
        %v460 = vunpack.c.l.b16 %v420
        %v461 = vunpack.c.h.b16 %v420
        %v462 = vunpack.c.l.b16 %v421
        %v463 = vunpack.c.h.b16 %v421
        %v464 = vunpack.c.l.b16 %v422
        %v465 = vunpack.c.h.b16 %v422
        %v466 = vunpack.c.l.b16 %v423
        %v467 = vunpack.c.h.b16 %v423
        %v468 = vunpack.c.l.b16 %v424
        %v469 = vunpack.c.h.b16 %v424
        %v470 = vunpack.c.l.b16 %v425
        %v471 = vunpack.c.h.b16 %v425
        %v472 = vunpack.c.l.b16 %v426
        %v473 = vunpack.c.h.b16 %v426
        %v474 = vunpack.c.l.b16 %v427
        %v475 = vunpack.c.h.b16 %v427
        %v476 = vpack.c.b16 %v446, %v444
        %v477 = vpack.c.b16 %v447, %v445
        %v478 = vpack.c.b16 %v450, %v448
        %v479 = vpack.c.b16 %v451, %v449
        %v480 = vpack.c.b16 %v454, %v452
        %v481 = vpack.c.b16 %v455, %v453
        %v482 = vpack.c.b16 %v458, %v456
        %v483 = vpack.c.b16 %v459, %v457
        %v484 = vpack.c.b16 %v462, %v460
        %v485 = vpack.c.b16 %v463, %v461
        %v486 = vpack.c.b16 %v466, %v464
        %v487 = vpack.c.b16 %v467, %v465
        %v488 = vpack.c.b16 %v470, %v468
        %v489 = vpack.c.b16 %v471, %v469
        %v490 = vpack.c.b16 %v474, %v472
        %v491 = vpack.c.b16 %v475, %v473
        %508 = vmatprep.subr.bf16.mxu0 %v491
        %509 = vmatpush1.bf16.msra.mxu0 %v490
        %510 = vmatprep.subr.bf16.mxu0 %v489
        %511 = vmatpush1.bf16.msra.mxu0 %v488
        %512 = vmatprep.subr.bf16.mxu0 %v487
        %513 = vmatpush1.bf16.msra.mxu0 %v486
        %514 = vmatprep.subr.bf16.mxu0 %v485
        %515 = vmatpush1.bf16.msra.mxu0 %v484
        %516 = vmatprep.subr.bf16.mxu0 %v483
        %517 = vmatpush1.bf16.msra.mxu0 %v482
        %518 = vmatprep.subr.bf16.mxu0 %v481
        %519 = vmatpush1.bf16.msra.mxu0 %v480
        %520 = vmatprep.subr.bf16.mxu0 %v479
        %521 = vmatpush1.bf16.msra.mxu0 %v478
        %522 = vmatprep.subr.bf16.mxu0 %v477
        %523 = vmatpush1.bf16.msra.mxu0 %v476
        %524 = vmatprep.subr.bf16.mxu0 0
        %525 = vmatpush2.bf16.msra.mxu0 0
        %526 = vmatprep.subr.bf16.mxu0 0
        %527 = vmatpush2.bf16.msra.mxu0 0
        %528 = vmatprep.subr.bf16.mxu0 0
        %529 = vmatpush2.bf16.msra.mxu0 0
        %530 = vmatprep.subr.bf16.mxu0 0
        %531 = vmatpush2.bf16.msra.mxu0 0
        %532 = vmatprep.subr.bf16.mxu0 0
        %533 = vmatpush2.bf16.msra.mxu0 0
        %534 = vmatprep.subr.bf16.mxu0 0
        %535 = vmatpush2.bf16.msra.mxu0 0
        %536 = vmatprep.subr.bf16.mxu0 0
        %537 = vmatpush2.bf16.msra.mxu0 0
        %538 = vmatprep.subr.bf16.mxu0 0
        %539 = vmatpush2.bf16.msra.mxu0 0
        %540 = vmatprep.mubr.bf16.mxu0 0
        %541 = vmatmul.mubr.bf16.gmra.mxu0 %v411
        %v542 = vpop.f32.mrf.mxu0
        %v543 = vadd.f32 0.0, %v542
        %v544 = vpop.f32.mrf.mxu0
        %v545 = vadd.f32 0.0, %v544
        %v546 = vpop.f32.mrf.mxu0
        %v547 = vpop.f32.mrf.mxu0
        %548 = vdwg.mxu0
        %v549 = vld [vmem:[%s347] sm:$0xff]
        %v550 = vpack.c.bf16 %v549, %v549
        %v551 = vld [vmem:[#allocation10] sm:$0xff]
        %v552 = vld [vmem:[#allocation10 + $0x8] sm:$0xff]
        %v553 = vld [vmem:[#allocation10 + $0x10] sm:$0xff]
        %v554 = vld [vmem:[#allocation10 + $0x18] sm:$0xff]
        %v559 = vunpack.c.l.b16 %v551
        %v560 = vunpack.c.h.b16 %v551
        %v561 = vunpack.c.l.b16 %v552
        %v562 = vunpack.c.h.b16 %v552
        %v563 = vunpack.c.l.b16 %v553
        %v564 = vunpack.c.h.b16 %v553
        %v565 = vunpack.c.l.b16 %v554
        %v566 = vunpack.c.h.b16 %v554
        %v567 = vpack.c.b16 %v561, %v559
        %v568 = vpack.c.b16 %v562, %v560
        %v569 = vpack.c.b16 %v565, %v563
        %v570 = vpack.c.b16 %v566, %v564
        %vm575 = vcmask 261120
        %v577 = vsel %vm575, %v550, 0
        %579 = vmatprep.subr.bf16.mxu0 0
        %580 = vmatpush1.bf16.msra.mxu0 0
        %581 = vmatprep.subr.bf16.mxu0 0
        %582 = vmatpush1.bf16.msra.mxu0 0
        %583 = vmatprep.subr.bf16.mxu0 0
        %584 = vmatpush1.bf16.msra.mxu0 0
        %585 = vmatprep.subr.bf16.mxu0 0
        %586 = vmatpush1.bf16.msra.mxu0 0
        %587 = vmatprep.subr.bf16.mxu0 0
        %588 = vmatpush1.bf16.msra.mxu0 0
        %589 = vmatprep.subr.bf16.mxu0 0
        %590 = vmatpush1.bf16.msra.mxu0 0
        %591 = vmatprep.subr.bf16.mxu0 %v570
        %592 = vmatpush1.bf16.msra.mxu0 %v569
        %593 = vmatprep.subr.bf16.mxu0 %v568
        %594 = vmatpush1.bf16.msra.mxu0 %v567
        %595 = vmatprep.subr.bf16.mxu0 0
        %596 = vmatpush2.bf16.msra.mxu0 0
        %597 = vmatprep.subr.bf16.mxu0 0
        %598 = vmatpush2.bf16.msra.mxu0 0
        %599 = vmatprep.subr.bf16.mxu0 0
        %600 = vmatpush2.bf16.msra.mxu0 0
        %601 = vmatprep.subr.bf16.mxu0 0
        %602 = vmatpush2.bf16.msra.mxu0 0
        %603 = vmatprep.subr.bf16.mxu0 0
        %604 = vmatpush2.bf16.msra.mxu0 0
        %605 = vmatprep.subr.bf16.mxu0 0
        %606 = vmatpush2.bf16.msra.mxu0 0
        %607 = vmatprep.subr.bf16.mxu0 0
        %608 = vmatpush2.bf16.msra.mxu0 0
        %609 = vmatprep.subr.bf16.mxu0 0
        %610 = vmatpush2.bf16.msra.mxu0 0
        %611 = vmatprep.mubr.bf16.mxu0 0
        %612 = vmatmul.mubr.bf16.gmra.mxu0 %v577
        %v613 = vpop.f32.mrf.mxu0
        %v614 = vadd.f32 0.0, %v613
        %v615 = vpop.f32.mrf.mxu0
        %v616 = vadd.f32 0.0, %v615
        %v617 = vpop.f32.mrf.mxu0
        %v618 = vpop.f32.mrf.mxu0
        %619 = vdwg.mxu0
        %v620 = vld [vmem:[%s356] sm:$0xff]
        %v621 = vpack.c.bf16 %v620, %v620
        %v622 = vld [vmem:[#allocation11] sm:$0xff]
        %v623 = vld [vmem:[#allocation11 + $0x8] sm:$0xff]
        %v624 = vld [vmem:[#allocation11 + $0x10] sm:$0xff]
        %v625 = vld [vmem:[#allocation11 + $0x18] sm:$0xff]
        %v630 = vunpack.c.l.b16 %v622
        %v631 = vunpack.c.h.b16 %v622
        %v632 = vunpack.c.l.b16 %v623
        %v633 = vunpack.c.h.b16 %v623
        %v634 = vunpack.c.l.b16 %v624
        %v635 = vunpack.c.h.b16 %v624
        %v636 = vunpack.c.l.b16 %v625
        %v637 = vunpack.c.h.b16 %v625
        %v638 = vpack.c.b16 %v632, %v630
        %v639 = vpack.c.b16 %v633, %v631
        %v640 = vpack.c.b16 %v636, %v634
        %v641 = vpack.c.b16 %v637, %v635
        %v647 = vsel %vm575, %v621, 0
        %649 = vmatprep.subr.bf16.mxu0 0
        %650 = vmatpush1.bf16.msra.mxu0 0
        %651 = vmatprep.subr.bf16.mxu0 0
        %652 = vmatpush1.bf16.msra.mxu0 0
        %653 = vmatprep.subr.bf16.mxu0 0
        %654 = vmatpush1.bf16.msra.mxu0 0
        %655 = vmatprep.subr.bf16.mxu0 0
        %656 = vmatpush1.bf16.msra.mxu0 0
        %657 = vmatprep.subr.bf16.mxu0 0
        %658 = vmatpush1.bf16.msra.mxu0 0
        %659 = vmatprep.subr.bf16.mxu0 0
        %660 = vmatpush1.bf16.msra.mxu0 0
        %661 = vmatprep.subr.bf16.mxu0 %v641
        %662 = vmatpush1.bf16.msra.mxu0 %v640
        %663 = vmatprep.subr.bf16.mxu0 %v639
        %664 = vmatpush1.bf16.msra.mxu0 %v638
        %665 = vmatprep.subr.bf16.mxu0 0
        %666 = vmatpush2.bf16.msra.mxu0 0
        %667 = vmatprep.subr.bf16.mxu0 0
        %668 = vmatpush2.bf16.msra.mxu0 0
        %669 = vmatprep.subr.bf16.mxu0 0
        %670 = vmatpush2.bf16.msra.mxu0 0
        %671 = vmatprep.subr.bf16.mxu0 0
        %672 = vmatpush2.bf16.msra.mxu0 0
        %673 = vmatprep.subr.bf16.mxu0 0
        %674 = vmatpush2.bf16.msra.mxu0 0
        %675 = vmatprep.subr.bf16.mxu0 0
        %676 = vmatpush2.bf16.msra.mxu0 0
        %677 = vmatprep.subr.bf16.mxu0 0
        %678 = vmatpush2.bf16.msra.mxu0 0
        %679 = vmatprep.subr.bf16.mxu0 0
        %680 = vmatpush2.bf16.msra.mxu0 0
        %681 = vmatprep.mubr.bf16.mxu0 0
        %682 = vmatmul.mubr.bf16.gmra.mxu0 %v647
        %v683 = vpop.f32.mrf.mxu0
        %v684 = vadd.f32 0.0, %v683
        %v685 = vpop.f32.mrf.mxu0
        %v686 = vadd.f32 0.0, %v685
        %v687 = vpop.f32.mrf.mxu0
        %v688 = vpop.f32.mrf.mxu0
        %689 = vdwg.mxu0
        %v690 = vld [vmem:[%s6] sm:$0x1]
        %v691 = vld [vmem:[%s6 + $0x1] sm:$0x1]
        %v692 = vld [vmem:[%s6 + $0x2] sm:$0x1]
        %v693 = vld [vmem:[%s6 + $0x3] sm:$0x1]
        %v694 = vld [vmem:[%s6 + $0x4] sm:$0x1]
        %v695 = vld [vmem:[%s6 + $0x5] sm:$0x1]
        %v696 = vadd.f32 %v543, %v614
        %v697 = vlaneseq
        %v698 = vshrl.u32 %v697, 7
        %v699 = vsub.s32 0, %v698
        %v700 = vrot.slane %v690, %v699
        %v701 = vadd.f32 %v696, %v700
        %v702 = vmax.f32 %v701, 0.0
        %v703 = vadd.f32 %v545, %v684
        %v704 = vlaneseq
        %v705 = vshrl.u32 %v704, 7
        %v706 = vsub.s32 0, %v705
        %v707 = vrot.slane %v691, %v706
        %v708 = vadd.f32 %v703, %v707
        %v709 = vmax.f32 %v708, 0.0
        %v710 = vlaneseq
        %v711 = vshrl.u32 %v710, 7
        %v712 = vsub.s32 0, %v711
        %v713 = vrot.slane %v692, %v712
        %v714 = vadd.f32 %v616, %v713
        %v715 = vlaneseq
        %v716 = vshrl.u32 %v715, 7
        %v717 = vsub.s32 0, %v716
        %v718 = vrot.slane %v693, %v717
        %v719 = vadd.f32 %v686, %v718
        %v720 = vmul.f32 %v702, %v714
        %v721 = vmul.f32 %v709, %v719
        %v722 = vadd.f32 %v720, %v721
        %v723 = vmul.f32 %v410, %v410
        %724 = vadd.xlane.f32.xlu0 %v723
        %v725 = vpop.xlane.xlu0 %724
        %v726 = vrsqrt.pop %v725
        %v727 = vmul.f32 %v725, %v726
        %vm728 = vcmp.eq.f32.partialorder %v725, inf
        %v729 = vsel %vm728, %v725, %v727
        %vm730 = vcmp.eq.f32.partialorder %v725, 0.0
        %v731 = vand.u32 %v725, 2147483648
        %v732 = vsel %vm730, %v731, %v729
        %v733 = vmul.f32 %v722, %v722
        %734 = vadd.xlane.f32.xlu0 %v733
        %v735 = vpop.xlane.xlu0 %734
        %v736 = vrsqrt.pop %v735
        %v737 = vmul.f32 %v735, %v736
        %vm738 = vcmp.eq.f32.partialorder %v735, inf
        %v739 = vsel %vm738, %v735, %v737
        %vm740 = vcmp.eq.f32.partialorder %v735, 0.0
        %v741 = vand.u32 %v735, 2147483648
        %v742 = vsel %vm740, %v741, %v739
        %vm743 = vcmp.eq.f32.partialorder %v742, 0.0
        %v744 = vsel %vm743, 1.0, %v742
        %v745 = vadd.f32 %v744, 1e-06
        %v746 = vrcp.pop %v745
        %v747 = vmul.f32 %v732, %v746
        %v748 = vmin.f32 %v747, 1.0
        %v749 = vmul.f32 %v748, %v722
        %v750 = vadd.f32 %v749, %v410
        %751 = vadd.xlane.f32.xlu0 %v750
        %v752 = vpop.xlane.xlu0 %751
        %v753 = vrcp.pop 128.0
        %v754 = vmul.f32 %v752, %v753
        %v755 = vsub.f32 %v750, %v754
        %v756 = vmul.f32 %v755, %v755
        %757 = vadd.xlane.f32.xlu0 %v756
        %v758 = vpop.xlane.xlu0 %757
        %v759 = vmul.f32 %v758, %v753
        %v760 = vadd.f32 %v759, 1e-05
        %v761 = vrsqrt.pop %v760
        %v762 = vmul.f32 %v755, %v761
        %v763 = vlaneseq
        %v764 = vshrl.u32 %v763, 7
        %v765 = vsub.s32 0, %v764
        %v766 = vrot.slane %v694, %v765
        %v767 = vmul.f32 %v762, %v766
        %v768 = vlaneseq
        %v769 = vshrl.u32 %v768, 7
        %v770 = vsub.s32 0, %v769
        %v771 = vrot.slane %v695, %v770
        %v772 = vadd.f32 %v767, %v771
        %773 = vst [vmem:[%s408] sm:$0xff] %v772
        %s774 = sand.u32 %s199, 1
        %s775 = scalar_lea.sflag [#allocation4], %s774
        %s776 = sand.u32 %s199, 1
        %s777 = smul.addr %s776, 8
        %s778 = scalar_lea.vmem [#allocation13], %s777
        // Predicated region
        $region73: #{tpu_custom_call.1} parent=47 // pred_check
          %p779 = pneg %p209
        $region74: #{tpu_custom_call.1} parent=47 // pred_check_branch
          %781 = sbr.rel (%p779) target = $region76
        $region75: #{tpu_custom_call.1} parent=47 // pred_region
          %s783 = ssub.s32 128, 128
          %784 = vsyncadd %s775, %s783
          %s785 = smul.addr %s29, 128
          %s786 = scalar_lea.hbm %s7, %s785
          %s788 = sshll.u32 %s778, 4
          %s789 = int_to_ptr.vmem [resolvable:$true] %s788
          %791 = dma.vmem_to_hbm [thread:$0]  %s789, 128, %s786, %s775
        $region76: #{tpu_custom_call.1} parent=47 // pred_fallthru
          _
      $region48: #{tpu_custom_call.1} parent=5 // pred_fallthru
        _
      %p792 = scmp.le.s32.totalorder 2, %s24
      // Predicated region
      $region77: #{tpu_custom_call.1} parent=5 // pred_check
        %p793 = pneg %p792
      $region78: #{tpu_custom_call.1} parent=5 // pred_check_branch
        %795 = sbr.rel (%p793) target = $region80
      $region79: #{tpu_custom_call.1} parent=5 // pred_region
        %s796 = ssub.s32 %s24, 2
        // Predicated region
        $region81: #{tpu_custom_call.1} parent=79 // pred_check
          %p797 = pneg %p215
        $region82: #{tpu_custom_call.1} parent=79 // pred_check_branch
          %799 = sbr.rel (%p797) target = $region84
        $region83: #{tpu_custom_call.1} parent=79 // pred_region
          %s800 = sand.u32 %s200, 1
          %s801 = scalar_lea.sflag [#allocation4], %s800
          %s802 = sand.u32 %s200, 1
          %s803 = smul.addr %s802, 8
          %s804 = scalar_lea.vmem [#allocation13], %s803
          %805 = dma.done %s801, 128
        $region84: #{tpu_custom_call.1} parent=79 // pred_fallthru
          _
      $region80: #{tpu_custom_call.1} parent=5 // pred_fallthru
        _
    $region6: #{tpu_custom_call.1} parent=1 // loop_footer
      %s28 = sadd.s32 1, %s24
    $region7: #{tpu_custom_call.1} parent=1 // loop_footer_branch
      %23 = sbr.rel target = $region3
    $region8: #{tpu_custom_call.1} parent=1 // loop_exit
      _
    %806 = vsyncpa [#allocation3], 1
    %s807 = scalar_lea.sflag [#allocation3], 1
    %808 = vsyncpa %s807, 1
    %809 = vsyncpa [#allocation6], 1
    %s810 = scalar_lea.sflag [#allocation6], 1
    %811 = vsyncpa %s810, 1
    %812 = vsyncpa [#allocation9], 1
    %813 = vsyncpa [#allocation12], 1
    %814 = vsyncpa [#allocation4], 1
    %s815 = scalar_lea.sflag [#allocation4], 1
    %816 = vsyncpa %s815, 1

</llo_original>
